<compile_context>
chip_gen: v6e
topology: v6e:2x2x1
jax: 0.10.0
libtpu: 0.0.40
codegen_flags: <defaults>
</compile_context>

<pallas_src>
import numpy as np
import jax
import jax.numpy as jnp
from jax import lax
from jax.experimental import pallas as pl
from jax.experimental.pallas import tpu as pltpu


# ----------------------------- fused Pallas kernel ---------------------------

def make_wide_basic_kernel(NB, H, W, Cin, Cmid, Cout, Ho, Wo, stride,
                           has_shortcut):
    """bn1+relu -> conv1 -> bn2+relu -> conv2(stride) -> +shortcut, fused."""
    LIN, LMID, LOUT = W * Cin, W * Cmid, Wo * Cout

    def kernel(*args):
        if has_shortcut:
            (x_ref, s1_ref, t1_ref, w1_ref, b1_ref,
             s2_ref, t2_ref, w2_ref, b2_ref,
             sw_ref, sb_ref, o_ref, xp1_ref, xp2_ref) = args
        else:
            (x_ref, s1_ref, t1_ref, w1_ref, b1_ref,
             s2_ref, t2_ref, w2_ref, b2_ref,
             o_ref, xp1_ref, xp2_ref) = args
            sw_ref = sb_ref = None

        # Zero ONLY the two H-padding rows (W padding is baked into the banded
        # weights).  Done once per grid step (safe under megacore sharding:
        # each core re-zeros its own scratch border); interior rows 1..H are
        # fully overwritten below, so no full-scratch zero / double write.
        xp1_ref[0:1, :] = jnp.zeros((1, LIN), jnp.float32)
        xp1_ref[H + 1:H + 2, :] = jnp.zeros((1, LIN), jnp.float32)
        xp2_ref[0:1, :] = jnp.zeros((1, LMID), jnp.float32)
        xp2_ref[H + 1:H + 2, :] = jnp.zeros((1, LMID), jnp.float32)

        for i in range(NB):                       # static, NB in {1, N}
            # ---- bn1 + relu (VPU), lane-dense (H, W*Cin) ---------------------
            x2 = x_ref[i]                                        # (H, W*Cin)
            a1 = jnp.maximum(x2 * s1_ref[...] + t1_ref[...], 0.0)

            # ---- conv1: H-pad via scratch, 3 banded matmuls (K = W*Cin) ------
            xp1_ref[1:H + 1, :] = a1
            acc1 = jnp.zeros((H, LMID), jnp.float32)
            for dy in range(3):
                acc1 = acc1 + jnp.dot(xp1_ref[dy:dy + H, :], w1_ref[dy],
                                      preferred_element_type=jnp.float32)

            # ---- bias1 + bn2 + relu (dropout == identity in eval mode) ------
            a2 = jnp.maximum((acc1 + b1_ref[...]) * s2_ref[...] + t2_ref[...],
                             0.0)

            # ---- conv2: stride along H via tap row selection, along W it is
            # ---- baked into the banded weight matrix -------------------------
            xp2_ref[1:H + 1, :] = a2
            acc2 = jnp.zeros((Ho, LOUT), jnp.float32)
            for dy in range(3):
                if stride == 1:
                    tap = xp2_ref[dy:dy + H, :]
                else:
                    tap = xp2_ref[pl.ds(dy, Ho, stride), :]
                acc2 = acc2 + jnp.dot(tap, w2_ref[dy],
                                      preferred_element_type=jnp.float32)
            out = acc2 + b2_ref[...]

            # ---- shortcut + residual add -------------------------------------
            if has_shortcut:
                if stride == 1:
                    xs = x2
                else:
                    xs = x_ref[i, pl.ds(0, Ho, stride), :]
                out = out + (jnp.dot(xs, sw_ref[...],
                                     preferred_element_type=jnp.float32)
                             + sb_ref[...])
            else:
                out = out + x2    # stride==1 and Cin==Cout: identical layout

            # Lane-dense store: (Ho, Wo*Cout) = (16, 128) -> unmasked vst.
            o_ref[i] = out.astype(o_ref.dtype)

    return kernel


# ---------------------- host-side banded weight construction ------------------

def _shift_indicator(w_in, w_out, stride):
    """S[xo, kx, wi] = 1 iff wi == xo*stride + kx - 1 and 0 <= wi < w_in."""
    s = np.zeros((w_out, 3, w_in), np.float32)
    for xo in range(w_out):
        for kx in range(3):
            wi = xo * stride + kx - 1
            if 0 <= wi < w_in:
                s[xo, kx, wi] = 1.0
    return s


def _stride_indicator(w_in, w_out, stride):
    s = np.zeros((w_out, w_in), np.float32)
    for xo in range(w_out):
        s[xo, xo * stride] = 1.0
    return s


def _default_images_per_block(batch):
    # v7x has 2 TensorCores per device: keep grid=(N,) "parallel" so each core
    # takes an image.  Single-TC v5e/v6e: fold the whole batch into one grid
    # step (saves per-step overhead, the dominant cost on a few-us kernel).
    try:
        kind = jax.devices()[0].device_kind.lower()
    except Exception:
        kind = ""
    if ("v7" in kind or "7x" in kind) and batch > 1:
        return 1
    return batch


# ------------------------------- forward wrapper ------------------------------

def wide_basic_forward(x_nchw, params, stride=1, images_per_block=None):
    """Forward of wide_basic (eval mode). x_nchw: (N, in_planes, H, W)."""
    eps = 1e-5
    w1 = jnp.asarray(params['conv1_w'], jnp.float32)   # (3, 3, Cin, Cmid) HWIO
    w2 = jnp.asarray(params['conv2_w'], jnp.float32)   # (3, 3, Cmid, Cout)
    Cin, Cmid = w1.shape[2], w1.shape[3]
    Cout = w2.shape[3]
    N, _, H, W = x_nchw.shape
    Ho = (H - 1) // stride + 1
    Wo = (W - 1) // stride + 1
    has_shortcut = (stride != 1) or (Cin != Cout)

    NB = images_per_block or _default_images_per_block(N)
    assert N % NB == 0
    num_blocks = N // NB
    LIN, LMID, LOUT = W * Cin, W * Cmid, Wo * Cout

    # Lane-dense input: NCHW -> NHWC -> (N, H, W*Cin). Pure layout plumbing.
    x = jnp.transpose(x_nchw, (0, 2, 3, 1)).astype(jnp.float32)
    x = x.reshape(N, H, LIN)

    # Fold eval-mode BN into per-channel scale/shift, tiled to the
    # pixel-major / channel-minor lane layout.
    s1 = params['bn1_gamma'] / jnp.sqrt(params['bn1_var'] + eps)
    t1 = params['bn1_beta'] - params['bn1_mean'] * s1
    s2 = params['bn2_gamma'] / jnp.sqrt(params['bn2_var'] + eps)
    t2 = params['bn2_beta'] - params['bn2_mean'] * s2
    s1t = jnp.tile(s1, W).reshape(1, LIN).astype(jnp.float32)
    t1t = jnp.tile(t1, W).reshape(1, LIN).astype(jnp.float32)
    s2t = jnp.tile(s2, W).reshape(1, LMID).astype(jnp.float32)
    t2t = jnp.tile(t2, W).reshape(1, LMID).astype(jnp.float32)
    b1t = jnp.tile(jnp.asarray(params['conv1_b']), W).reshape(1, LMID).astype(jnp.float32)
    b2t = jnp.tile(jnp.asarray(params['conv2_b']), Wo).reshape(1, LOUT).astype(jnp.float32)

    # Banded conv matrices: M[dy] maps (W_in*Cin) -> (W_out*Cout) with the kx
    # taps, W-direction zero-padding and W-stride folded in.
    S1 = jnp.asarray(_shift_indicator(W, W, 1))
    S2 = jnp.asarray(_shift_indicator(W, Wo, stride))
    M1 = jnp.einsum('okw,ykic->ywioc', S1, w1).reshape(3, LIN, LMID)
    M2 = jnp.einsum('okw,ykic->ywioc', S2, w2).reshape(3, LMID, LOUT)

    in_specs = [
        pl.BlockSpec((NB, H, LIN), lambda n: (n, 0, 0)),    # x (lane-dense)
        pl.BlockSpec((1, LIN),     lambda n: (0, 0)),       # bn1 scale
        pl.BlockSpec((1, LIN),     lambda n: (0, 0)),       # bn1 shift
        pl.BlockSpec((3, LIN, LMID), lambda n: (0, 0, 0)),  # conv1 banded W
        pl.BlockSpec((1, LMID),    lambda n: (0, 0)),       # conv1 bias
        pl.BlockSpec((1, LMID),    lambda n: (0, 0)),       # bn2 scale
        pl.BlockSpec((1, LMID),    lambda n: (0, 0)),       # bn2 shift
        pl.BlockSpec((3, LMID, LOUT), lambda n: (0, 0, 0)), # conv2 banded W
        pl.BlockSpec((1, LOUT),    lambda n: (0, 0)),       # conv2 bias
    ]
    args = [x, s1t, t1t, M1, b1t, s2t, t2t, M2, b2t]

    if has_shortcut:
        sc_w = jnp.asarray(params['sc_w'], jnp.float32)     # (Cin, Cout)
        Ssc = jnp.asarray(_stride_indicator(W, Wo, stride))
        Msc = jnp.einsum('ow,ic->wioc', Ssc, sc_w).reshape(LIN, LOUT)
        sbt = jnp.tile(jnp.asarray(params['sc_b']), Wo).reshape(1, LOUT).astype(jnp.float32)
        in_specs += [pl.BlockSpec((LIN, LOUT), lambda n: (0, 0)),
                     pl.BlockSpec((1, LOUT),   lambda n: (0, 0))]
        args += [Msc, sbt]

    kernel = make_wide_basic_kernel(NB, H, W, Cin, Cmid, Cout, Ho, Wo, stride,
                                    has_shortcut)

    out = pl.pallas_call(
        kernel,
        out_shape=jax.ShapeDtypeStruct((N, Ho, LOUT), jnp.float32),
        grid=(num_blocks,),
        in_specs=in_specs,
        out_specs=pl.BlockSpec((NB, Ho, LOUT), lambda n: (n, 0, 0)),
        scratch_shapes=[pltpu.VMEM((H + 2, LIN), jnp.float32),   # H-padded a1
                        pltpu.VMEM((H + 2, LMID), jnp.float32)], # H-padded a2
        compiler_params=pltpu.CompilerParams(
            dimension_semantics=("parallel",)),
    )(*args)

    out = out.reshape(N, Ho, Wo, Cout)
    return jnp.transpose(out, (0, 3, 1, 2)).astype(x_nchw.dtype)   # -> NCHW


# ---------------------------------- reference ---------------------------------

def reference_forward(x_nchw, params, stride=1):
    eps = 1e-5
    Cin = params['conv1_w'].shape[2]
    Cout = params['conv2_w'].shape[3]
    dn = ('NHWC', 'HWIO', 'NHWC')

    def bn(y, g, b, m, v):
        return (y - m) * (g / jnp.sqrt(v + eps)) + b

    x = jnp.transpose(x_nchw, (0, 2, 3, 1))
    out = jax.nn.relu(bn(x, params['bn1_gamma'], params['bn1_beta'],
                         params['bn1_mean'], params['bn1_var']))
    out = lax.conv_general_dilated(out, params['conv1_w'], (1, 1),
                                   ((1, 1), (1, 1)), dimension_numbers=dn) + params['conv1_b']
    out = jax.nn.relu(bn(out, params['bn2_gamma'], params['bn2_beta'],
                         params['bn2_mean'], params['bn2_var']))
    out = lax.conv_general_dilated(out, params['conv2_w'], (stride, stride),
                                   ((1, 1), (1, 1)), dimension_numbers=dn) + params['conv2_b']
    if stride != 1 or Cin != Cout:
        sw = params['sc_w'].reshape(1, 1, Cin, Cout)
        short = lax.conv_general_dilated(x, sw, (stride, stride),
                                         ((0, 0), (0, 0)), dimension_numbers=dn) + params['sc_b']
    else:
        short = x
    return jnp.transpose(out + short, (0, 3, 1, 2))


# ------------------------------------ main ------------------------------------

if __name__ == "__main__":
    def make_params(key, in_planes, planes, with_shortcut):
        ks = jax.random.split(key, 16)
        p = {
            'bn1_gamma': 1.0 + 0.1 * jax.random.normal(ks[1], (in_planes,), jnp.float32),
            'bn1_beta':        0.1 * jax.random.normal(ks[2], (in_planes,), jnp.float32),
            'bn1_mean':        0.1 * jax.random.normal(ks[3], (in_planes,), jnp.float32),
            'bn1_var':  jax.random.uniform(ks[4], (in_planes,), jnp.float32, 0.5, 1.5),
            'conv1_w':  0.1 * jax.random.normal(ks[5], (3, 3, in_planes, planes), jnp.float32),
            'conv1_b':  0.1 * jax.random.normal(ks[6], (planes,), jnp.float32),
            'bn2_gamma': 1.0 + 0.1 * jax.random.normal(ks[7], (planes,), jnp.float32),
            'bn2_beta':        0.1 * jax.random.normal(ks[8], (planes,), jnp.float32),
            'bn2_mean':        0.1 * jax.random.normal(ks[9], (planes,), jnp.float32),
            'bn2_var':  jax.random.uniform(ks[10], (planes,), jnp.float32, 0.5, 1.5),
            'conv2_w':  0.1 * jax.random.normal(ks[11], (3, 3, planes, planes), jnp.float32),
            'conv2_b':  0.1 * jax.random.normal(ks[12], (planes,), jnp.float32),
        }
        if with_shortcut:
            p['sc_w'] = 0.1 * jax.random.normal(ks[13], (in_planes, planes), jnp.float32)
            p['sc_b'] = 0.1 * jax.random.normal(ks[14], (planes,), jnp.float32)
        return p

    key = jax.random.PRNGKey(0)
    k_x1, k_p1, k_x2, k_p2 = jax.random.split(key, 4)

    # Config 1: wide_basic(in_planes=4, planes=8, dropout_rate=0.3, stride=1)
    # (1x1-conv shortcut path)
    N, H, W = 2, 16, 16
    in_planes, planes, stride = 4, 8, 1
    x1 = jax.random.normal(k_x1, (N, in_planes, H, W), jnp.float32)
    p1 = make_params(k_p1, in_planes, planes, with_shortcut=True)
    out1 = jax.block_until_ready(wide_basic_forward(x1, p1, stride=stride))
    ref1 = reference_forward(x1, p1, stride=stride)
    assert out1.shape == (N, planes, H, W), out1.shape
    err1 = float(jnp.max(jnp.abs(out1 - ref1)))
    assert err1 < 3e-4, f"config1 max abs error {err1}"

    # Config 2: identity-shortcut path (in_planes == planes, stride=1)
    x2 = jax.random.normal(k_x2, (N, planes, H, W), jnp.float32)
    p2 = make_params(k_p2, planes, planes, with_shortcut=False)
    out2 = jax.block_until_ready(wide_basic_forward(x2, p2, stride=1))
    ref2 = reference_forward(x2, p2, stride=1)
    err2 = float(jnp.max(jnp.abs(out2 - ref2)))
    assert err2 < 3e-4, f"config2 max abs error {err2}"

    print("KERNEL_OK")
</pallas_src>

<mosaic_0001>
module attributes {stable_mosaic.version = 11 : i64} {
  func.func @kernel(%arg0: i32, %arg1: memref<2x16x64xf32, #tpu.memory_space<vmem>>, %arg2: memref<1x64xf32, #tpu.memory_space<vmem>>, %arg3: memref<1x64xf32, #tpu.memory_space<vmem>>, %arg4: memref<3x64x128xf32, #tpu.memory_space<vmem>>, %arg5: memref<1x128xf32, #tpu.memory_space<vmem>>, %arg6: memref<1x128xf32, #tpu.memory_space<vmem>>, %arg7: memref<1x128xf32, #tpu.memory_space<vmem>>, %arg8: memref<3x128x128xf32, #tpu.memory_space<vmem>>, %arg9: memref<1x128xf32, #tpu.memory_space<vmem>>, %arg10: memref<64x128xf32, #tpu.memory_space<vmem>>, %arg11: memref<1x128xf32, #tpu.memory_space<vmem>>, %arg12: memref<2x16x128xf32, #tpu.memory_space<vmem>>, %arg13: memref<18x64xf32, #tpu.memory_space<vmem>>, %arg14: memref<18x128xf32, #tpu.memory_space<vmem>>) attributes {dimension_semantics = [#tpu.dimension_semantics<parallel>], iteration_bounds = array<i64: 1>, scalar_prefetch = 0 : i64, scratch_operands = 2 : i64, tpu.core_type = #tpu.core_type<tc>, window_params = [{transform_indices = @transform_0, window_bounds = array<i64: 2, 16, 64>}, {pipeline_mode = #tpu.pipeline_mode<synchronous>, transform_indices = @transform_1, window_bounds = array<i64: 1, 64>}, {pipeline_mode = #tpu.pipeline_mode<synchronous>, transform_indices = @transform_2, window_bounds = array<i64: 1, 64>}, {pipeline_mode = #tpu.pipeline_mode<synchronous>, transform_indices = @transform_3, window_bounds = array<i64: 3, 64, 128>}, {pipeline_mode = #tpu.pipeline_mode<synchronous>, transform_indices = @transform_4, window_bounds = array<i64: 1, 128>}, {pipeline_mode = #tpu.pipeline_mode<synchronous>, transform_indices = @transform_5, window_bounds = array<i64: 1, 128>}, {pipeline_mode = #tpu.pipeline_mode<synchronous>, transform_indices = @transform_6, window_bounds = array<i64: 1, 128>}, {pipeline_mode = #tpu.pipeline_mode<synchronous>, transform_indices = @transform_7, window_bounds = array<i64: 3, 128, 128>}, {pipeline_mode = #tpu.pipeline_mode<synchronous>, transform_indices = @transform_8, window_bounds = array<i64: 1, 128>}, {pipeline_mode = #tpu.pipeline_mode<synchronous>, transform_indices = @transform_9, window_bounds = array<i64: 64, 128>}, {pipeline_mode = #tpu.pipeline_mode<synchronous>, transform_indices = @transform_10, window_bounds = array<i64: 1, 128>}, {transform_indices = @transform_11, window_bounds = array<i64: 2, 16, 128>}]} {
    %cst = arith.constant 0.000000e+00 : f32
    %0 = vector.broadcast %cst : f32 to vector<1x64xf32>
    %c0 = arith.constant 0 : index
    %c0_0 = arith.constant 0 : index
    %1 = vector.load %arg13[%c0, %c0_0] : memref<18x64xf32, #tpu.memory_space<vmem>>, vector<1x64xf32>
    tpu.vector_store %arg13[%c0, %c0_0], %0 {strides = array<i32>} : memref<18x64xf32, #tpu.memory_space<vmem>>, vector<1x64xf32>,
    %cst_1 = arith.constant 0.000000e+00 : f32
    %2 = vector.broadcast %cst_1 : f32 to vector<1x64xf32>
    %c17 = arith.constant 17 : index
    %c0_2 = arith.constant 0 : index
    %3 = vector.load %arg13[%c17, %c0_2] : memref<18x64xf32, #tpu.memory_space<vmem>>, vector<1x64xf32>
    tpu.vector_store %arg13[%c17, %c0_2], %2 {strides = array<i32>} : memref<18x64xf32, #tpu.memory_space<vmem>>, vector<1x64xf32>,
    %cst_3 = arith.constant 0.000000e+00 : f32
    %4 = vector.broadcast %cst_3 : f32 to vector<1x128xf32>
    %c0_4 = arith.constant 0 : index
    %c0_5 = arith.constant 0 : index
    %5 = vector.load %arg14[%c0_4, %c0_5] : memref<18x128xf32, #tpu.memory_space<vmem>>, vector<1x128xf32>
    tpu.vector_store %arg14[%c0_4, %c0_5], %4 {strides = array<i32>} : memref<18x128xf32, #tpu.memory_space<vmem>>, vector<1x128xf32>,
    %cst_6 = arith.constant 0.000000e+00 : f32
    %6 = vector.broadcast %cst_6 : f32 to vector<1x128xf32>
    %c17_7 = arith.constant 17 : index
    %c0_8 = arith.constant 0 : index
    %7 = vector.load %arg14[%c17_7, %c0_8] : memref<18x128xf32, #tpu.memory_space<vmem>>, vector<1x128xf32>
    tpu.vector_store %arg14[%c17_7, %c0_8], %6 {strides = array<i32>} : memref<18x128xf32, #tpu.memory_space<vmem>>, vector<1x128xf32>,
    %c0_9 = arith.constant 0 : index
    %c0_10 = arith.constant 0 : index
    %c0_11 = arith.constant 0 : index
    %8 = vector.load %arg1[%c0_9, %c0_10, %c0_11] : memref<2x16x64xf32, #tpu.memory_space<vmem>>, vector<1x16x64xf32>
    %9 = vector.shape_cast %8 : vector<1x16x64xf32> to vector<16x64xf32>
    %c0_12 = arith.constant 0 : index
    %c0_13 = arith.constant 0 : index
    %10 = vector.load %arg2[%c0_12, %c0_13] : memref<1x64xf32, #tpu.memory_space<vmem>>, vector<1x64xf32>
    %11 = vector.broadcast %10 : vector<1x64xf32> to vector<16x64xf32>
    %12 = arith.mulf %9, %11 : vector<16x64xf32>
    %c0_14 = arith.constant 0 : index
    %c0_15 = arith.constant 0 : index
    %13 = vector.load %arg3[%c0_14, %c0_15] : memref<1x64xf32, #tpu.memory_space<vmem>>, vector<1x64xf32>
    %14 = vector.broadcast %13 : vector<1x64xf32> to vector<16x64xf32>
    %15 = arith.addf %12, %14 : vector<16x64xf32>
    %cst_16 = arith.constant 0.000000e+00 : f32
    %16 = vector.broadcast %cst_16 : f32 to vector<16x64xf32>
    %17 = arith.maximumf %15, %16 : vector<16x64xf32>
    %c1 = arith.constant 1 : index
    %c0_17 = arith.constant 0 : index
    %18 = vector.load %arg13[%c1, %c0_17] : memref<18x64xf32, #tpu.memory_space<vmem>>, vector<16x64xf32>
    tpu.vector_store %arg13[%c1, %c0_17], %17 {strides = array<i32>} : memref<18x64xf32, #tpu.memory_space<vmem>>, vector<16x64xf32>,
    %cst_18 = arith.constant 0.000000e+00 : f32
    %19 = vector.broadcast %cst_18 : f32 to vector<16x128xf32>
    %c0_19 = arith.constant 0 : index
    %c0_20 = arith.constant 0 : index
    %20 = vector.load %arg13[%c0_19, %c0_20] : memref<18x64xf32, #tpu.memory_space<vmem>>, vector<16x64xf32>
    %c0_21 = arith.constant 0 : index
    %c0_22 = arith.constant 0 : index
    %c0_23 = arith.constant 0 : index
    %21 = vector.load %arg4[%c0_21, %c0_22, %c0_23] : memref<3x64x128xf32, #tpu.memory_space<vmem>>, vector<1x64x128xf32>
    %22 = vector.shape_cast %21 : vector<1x64x128xf32> to vector<64x128xf32>
    %cst_24 = arith.constant dense<0.000000e+00> : vector<16x128xf32>
    %23 = tpu.matmul %20, %22, %cst_24 {dimension_numbers = #tpu.dot_dimension_numbers<[1], [0], [0], [1], [0, 0, 1, 1], [], []>} : vector<16x64xf32>, vector<64x128xf32>, vector<16x128xf32> -> vector<16x128xf32>
    %24 = arith.addf %19, %23 : vector<16x128xf32>
    %c1_25 = arith.constant 1 : index
    %c0_26 = arith.constant 0 : index
    %25 = vector.load %arg13[%c1_25, %c0_26] : memref<18x64xf32, #tpu.memory_space<vmem>>, vector<16x64xf32>
    %c1_27 = arith.constant 1 : index
    %c0_28 = arith.constant 0 : index
    %c0_29 = arith.constant 0 : index
    %26 = vector.load %arg4[%c1_27, %c0_28, %c0_29] : memref<3x64x128xf32, #tpu.memory_space<vmem>>, vector<1x64x128xf32>
    %27 = vector.shape_cast %26 : vector<1x64x128xf32> to vector<64x128xf32>
    %cst_30 = arith.constant dense<0.000000e+00> : vector<16x128xf32>
    %28 = tpu.matmul %25, %27, %cst_30 {dimension_numbers = #tpu.dot_dimension_numbers<[1], [0], [0], [1], [0, 0, 1, 1], [], []>} : vector<16x64xf32>, vector<64x128xf32>, vector<16x128xf32> -> vector<16x128xf32>
    %29 = arith.addf %24, %28 : vector<16x128xf32>
    %c2 = arith.constant 2 : index
    %c0_31 = arith.constant 0 : index
    %30 = vector.load %arg13[%c2, %c0_31] : memref<18x64xf32, #tpu.memory_space<vmem>>, vector<16x64xf32>
    %c2_32 = arith.constant 2 : index
    %c0_33 = arith.constant 0 : index
    %c0_34 = arith.constant 0 : index
    %31 = vector.load %arg4[%c2_32, %c0_33, %c0_34] : memref<3x64x128xf32, #tpu.memory_space<vmem>>, vector<1x64x128xf32>
    %32 = vector.shape_cast %31 : vector<1x64x128xf32> to vector<64x128xf32>
    %cst_35 = arith.constant dense<0.000000e+00> : vector<16x128xf32>
    %33 = tpu.matmul %30, %32, %cst_35 {dimension_numbers = #tpu.dot_dimension_numbers<[1], [0], [0], [1], [0, 0, 1, 1], [], []>} : vector<16x64xf32>, vector<64x128xf32>, vector<16x128xf32> -> vector<16x128xf32>
    %34 = arith.addf %29, %33 : vector<16x128xf32>
    %c0_36 = arith.constant 0 : index
    %c0_37 = arith.constant 0 : index
    %35 = vector.load %arg5[%c0_36, %c0_37] : memref<1x128xf32, #tpu.memory_space<vmem>>, vector<1x128xf32>
    %36 = vector.broadcast %35 : vector<1x128xf32> to vector<16x128xf32>
    %37 = arith.addf %34, %36 : vector<16x128xf32>
    %c0_38 = arith.constant 0 : index
    %c0_39 = arith.constant 0 : index
    %38 = vector.load %arg6[%c0_38, %c0_39] : memref<1x128xf32, #tpu.memory_space<vmem>>, vector<1x128xf32>
    %39 = vector.broadcast %38 : vector<1x128xf32> to vector<16x128xf32>
    %40 = arith.mulf %37, %39 : vector<16x128xf32>
    %c0_40 = arith.constant 0 : index
    %c0_41 = arith.constant 0 : index
    %41 = vector.load %arg7[%c0_40, %c0_41] : memref<1x128xf32, #tpu.memory_space<vmem>>, vector<1x128xf32>
    %42 = vector.broadcast %41 : vector<1x128xf32> to vector<16x128xf32>
    %43 = arith.addf %40, %42 : vector<16x128xf32>
    %cst_42 = arith.constant 0.000000e+00 : f32
    %44 = vector.broadcast %cst_42 : f32 to vector<16x128xf32>
    %45 = arith.maximumf %43, %44 : vector<16x128xf32>
    %c1_43 = arith.constant 1 : index
    %c0_44 = arith.constant 0 : index
    %46 = vector.load %arg14[%c1_43, %c0_44] : memref<18x128xf32, #tpu.memory_space<vmem>>, vector<16x128xf32>
    tpu.vector_store %arg14[%c1_43, %c0_44], %45 {strides = array<i32>} : memref<18x128xf32, #tpu.memory_space<vmem>>, vector<16x128xf32>,
    %cst_45 = arith.constant 0.000000e+00 : f32
    %47 = vector.broadcast %cst_45 : f32 to vector<16x128xf32>
    %c0_46 = arith.constant 0 : index
    %c0_47 = arith.constant 0 : index
    %48 = vector.load %arg14[%c0_46, %c0_47] : memref<18x128xf32, #tpu.memory_space<vmem>>, vector<16x128xf32>
    %c0_48 = arith.constant 0 : index
    %c0_49 = arith.constant 0 : index
    %c0_50 = arith.constant 0 : index
    %49 = vector.load %arg8[%c0_48, %c0_49, %c0_50] : memref<3x128x128xf32, #tpu.memory_space<vmem>>, vector<1x128x128xf32>
    %50 = vector.shape_cast %49 : vector<1x128x128xf32> to vector<128x128xf32>
    %cst_51 = arith.constant dense<0.000000e+00> : vector<16x128xf32>
    %51 = tpu.matmul %48, %50, %cst_51 {dimension_numbers = #tpu.dot_dimension_numbers<[1], [0], [0], [1], [0, 0, 1, 1], [], []>} : vector<16x128xf32>, vector<128x128xf32>, vector<16x128xf32> -> vector<16x128xf32>
    %52 = arith.addf %47, %51 : vector<16x128xf32>
    %c1_52 = arith.constant 1 : index
    %c0_53 = arith.constant 0 : index
    %53 = vector.load %arg14[%c1_52, %c0_53] : memref<18x128xf32, #tpu.memory_space<vmem>>, vector<16x128xf32>
    %c1_54 = arith.constant 1 : index
    %c0_55 = arith.constant 0 : index
    %c0_56 = arith.constant 0 : index
    %54 = vector.load %arg8[%c1_54, %c0_55, %c0_56] : memref<3x128x128xf32, #tpu.memory_space<vmem>>, vector<1x128x128xf32>
    %55 = vector.shape_cast %54 : vector<1x128x128xf32> to vector<128x128xf32>
    %cst_57 = arith.constant dense<0.000000e+00> : vector<16x128xf32>
    %56 = tpu.matmul %53, %55, %cst_57 {dimension_numbers = #tpu.dot_dimension_numbers<[1], [0], [0], [1], [0, 0, 1, 1], [], []>} : vector<16x128xf32>, vector<128x128xf32>, vector<16x128xf32> -> vector<16x128xf32>
    %57 = arith.addf %52, %56 : vector<16x128xf32>
    %c2_58 = arith.constant 2 : index
    %c0_59 = arith.constant 0 : index
    %58 = vector.load %arg14[%c2_58, %c0_59] : memref<18x128xf32, #tpu.memory_space<vmem>>, vector<16x128xf32>
    %c2_60 = arith.constant 2 : index
    %c0_61 = arith.constant 0 : index
    %c0_62 = arith.constant 0 : index
    %59 = vector.load %arg8[%c2_60, %c0_61, %c0_62] : memref<3x128x128xf32, #tpu.memory_space<vmem>>, vector<1x128x128xf32>
    %60 = vector.shape_cast %59 : vector<1x128x128xf32> to vector<128x128xf32>
    %cst_63 = arith.constant dense<0.000000e+00> : vector<16x128xf32>
    %61 = tpu.matmul %58, %60, %cst_63 {dimension_numbers = #tpu.dot_dimension_numbers<[1], [0], [0], [1], [0, 0, 1, 1], [], []>} : vector<16x128xf32>, vector<128x128xf32>, vector<16x128xf32> -> vector<16x128xf32>
    %62 = arith.addf %57, %61 : vector<16x128xf32>
    %c0_64 = arith.constant 0 : index
    %c0_65 = arith.constant 0 : index
    %63 = vector.load %arg9[%c0_64, %c0_65] : memref<1x128xf32, #tpu.memory_space<vmem>>, vector<1x128xf32>
    %64 = vector.broadcast %63 : vector<1x128xf32> to vector<16x128xf32>
    %65 = arith.addf %62, %64 : vector<16x128xf32>
    %c0_66 = arith.constant 0 : index
    %c0_67 = arith.constant 0 : index
    %66 = vector.load %arg10[%c0_66, %c0_67] : memref<64x128xf32, #tpu.memory_space<vmem>>, vector<64x128xf32>
    %cst_68 = arith.constant dense<0.000000e+00> : vector<16x128xf32>
    %67 = tpu.matmul %9, %66, %cst_68 {dimension_numbers = #tpu.dot_dimension_numbers<[1], [0], [0], [1], [0, 0, 1, 1], [], []>} : vector<16x64xf32>, vector<64x128xf32>, vector<16x128xf32> -> vector<16x128xf32>
    %c0_69 = arith.constant 0 : index
    %c0_70 = arith.constant 0 : index
    %68 = vector.load %arg11[%c0_69, %c0_70] : memref<1x128xf32, #tpu.memory_space<vmem>>, vector<1x128xf32>
    %69 = vector.broadcast %68 : vector<1x128xf32> to vector<16x128xf32>
    %70 = arith.addf %67, %69 : vector<16x128xf32>
    %71 = arith.addf %65, %70 : vector<16x128xf32>
    %c0_71 = arith.constant 0 : index
    %c0_72 = arith.constant 0 : index
    %c0_73 = arith.constant 0 : index
    %72 = vector.load %arg12[%c0_71, %c0_72, %c0_73] : memref<2x16x128xf32, #tpu.memory_space<vmem>>, vector<1x16x128xf32>
    %73 = vector.shape_cast %72 : vector<1x16x128xf32> to vector<16x128xf32>
    %74 = vector.shape_cast %71 : vector<16x128xf32> to vector<1x16x128xf32>
    tpu.vector_store %arg12[%c0_71, %c0_72, %c0_73], %74 {strides = array<i32>} : memref<2x16x128xf32, #tpu.memory_space<vmem>>, vector<1x16x128xf32>,
    %c1_74 = arith.constant 1 : index
    %c0_75 = arith.constant 0 : index
    %c0_76 = arith.constant 0 : index
    %75 = vector.load %arg1[%c1_74, %c0_75, %c0_76] : memref<2x16x64xf32, #tpu.memory_space<vmem>>, vector<1x16x64xf32>
    %76 = vector.shape_cast %75 : vector<1x16x64xf32> to vector<16x64xf32>
    %c0_77 = arith.constant 0 : index
    %c0_78 = arith.constant 0 : index
    %77 = vector.load %arg2[%c0_77, %c0_78] : memref<1x64xf32, #tpu.memory_space<vmem>>, vector<1x64xf32>
    %78 = vector.broadcast %77 : vector<1x64xf32> to vector<16x64xf32>
    %79 = arith.mulf %76, %78 : vector<16x64xf32>
    %c0_79 = arith.constant 0 : index
    %c0_80 = arith.constant 0 : index
    %80 = vector.load %arg3[%c0_79, %c0_80] : memref<1x64xf32, #tpu.memory_space<vmem>>, vector<1x64xf32>
    %81 = vector.broadcast %80 : vector<1x64xf32> to vector<16x64xf32>
    %82 = arith.addf %79, %81 : vector<16x64xf32>
    %cst_81 = arith.constant 0.000000e+00 : f32
    %83 = vector.broadcast %cst_81 : f32 to vector<16x64xf32>
    %84 = arith.maximumf %82, %83 : vector<16x64xf32>
    %c1_82 = arith.constant 1 : index
    %c0_83 = arith.constant 0 : index
    %85 = vector.load %arg13[%c1_82, %c0_83] : memref<18x64xf32, #tpu.memory_space<vmem>>, vector<16x64xf32>
    tpu.vector_store %arg13[%c1_82, %c0_83], %84 {strides = array<i32>} : memref<18x64xf32, #tpu.memory_space<vmem>>, vector<16x64xf32>,
    %cst_84 = arith.constant 0.000000e+00 : f32
    %86 = vector.broadcast %cst_84 : f32 to vector<16x128xf32>
    %c0_85 = arith.constant 0 : index
    %c0_86 = arith.constant 0 : index
    %87 = vector.load %arg13[%c0_85, %c0_86] : memref<18x64xf32, #tpu.memory_space<vmem>>, vector<16x64xf32>
    %c0_87 = arith.constant 0 : index
    %c0_88 = arith.constant 0 : index
    %c0_89 = arith.constant 0 : index
    %88 = vector.load %arg4[%c0_87, %c0_88, %c0_89] : memref<3x64x128xf32, #tpu.memory_space<vmem>>, vector<1x64x128xf32>
    %89 = vector.shape_cast %88 : vector<1x64x128xf32> to vector<64x128xf32>
    %cst_90 = arith.constant dense<0.000000e+00> : vector<16x128xf32>
    %90 = tpu.matmul %87, %89, %cst_90 {dimension_numbers = #tpu.dot_dimension_numbers<[1], [0], [0], [1], [0, 0, 1, 1], [], []>} : vector<16x64xf32>, vector<64x128xf32>, vector<16x128xf32> -> vector<16x128xf32>
    %91 = arith.addf %86, %90 : vector<16x128xf32>
    %c1_91 = arith.constant 1 : index
    %c0_92 = arith.constant 0 : index
    %92 = vector.load %arg13[%c1_91, %c0_92] : memref<18x64xf32, #tpu.memory_space<vmem>>, vector<16x64xf32>
    %c1_93 = arith.constant 1 : index
    %c0_94 = arith.constant 0 : index
    %c0_95 = arith.constant 0 : index
    %93 = vector.load %arg4[%c1_93, %c0_94, %c0_95] : memref<3x64x128xf32, #tpu.memory_space<vmem>>, vector<1x64x128xf32>
    %94 = vector.shape_cast %93 : vector<1x64x128xf32> to vector<64x128xf32>
    %cst_96 = arith.constant dense<0.000000e+00> : vector<16x128xf32>
    %95 = tpu.matmul %92, %94, %cst_96 {dimension_numbers = #tpu.dot_dimension_numbers<[1], [0], [0], [1], [0, 0, 1, 1], [], []>} : vector<16x64xf32>, vector<64x128xf32>, vector<16x128xf32> -> vector<16x128xf32>
    %96 = arith.addf %91, %95 : vector<16x128xf32>
    %c2_97 = arith.constant 2 : index
    %c0_98 = arith.constant 0 : index
    %97 = vector.load %arg13[%c2_97, %c0_98] : memref<18x64xf32, #tpu.memory_space<vmem>>, vector<16x64xf32>
    %c2_99 = arith.constant 2 : index
    %c0_100 = arith.constant 0 : index
    %c0_101 = arith.constant 0 : index
    %98 = vector.load %arg4[%c2_99, %c0_100, %c0_101] : memref<3x64x128xf32, #tpu.memory_space<vmem>>, vector<1x64x128xf32>
    %99 = vector.shape_cast %98 : vector<1x64x128xf32> to vector<64x128xf32>
    %cst_102 = arith.constant dense<0.000000e+00> : vector<16x128xf32>
    %100 = tpu.matmul %97, %99, %cst_102 {dimension_numbers = #tpu.dot_dimension_numbers<[1], [0], [0], [1], [0, 0, 1, 1], [], []>} : vector<16x64xf32>, vector<64x128xf32>, vector<16x128xf32> -> vector<16x128xf32>
    %101 = arith.addf %96, %100 : vector<16x128xf32>
    %c0_103 = arith.constant 0 : index
    %c0_104 = arith.constant 0 : index
    %102 = vector.load %arg5[%c0_103, %c0_104] : memref<1x128xf32, #tpu.memory_space<vmem>>, vector<1x128xf32>
    %103 = vector.broadcast %102 : vector<1x128xf32> to vector<16x128xf32>
    %104 = arith.addf %101, %103 : vector<16x128xf32>
    %c0_105 = arith.constant 0 : index
    %c0_106 = arith.constant 0 : index
    %105 = vector.load %arg6[%c0_105, %c0_106] : memref<1x128xf32, #tpu.memory_space<vmem>>, vector<1x128xf32>
    %106 = vector.broadcast %105 : vector<1x128xf32> to vector<16x128xf32>
    %107 = arith.mulf %104, %106 : vector<16x128xf32>
    %c0_107 = arith.constant 0 : index
    %c0_108 = arith.constant 0 : index
    %108 = vector.load %arg7[%c0_107, %c0_108] : memref<1x128xf32, #tpu.memory_space<vmem>>, vector<1x128xf32>
    %109 = vector.broadcast %108 : vector<1x128xf32> to vector<16x128xf32>
    %110 = arith.addf %107, %109 : vector<16x128xf32>
    %cst_109 = arith.constant 0.000000e+00 : f32
    %111 = vector.broadcast %cst_109 : f32 to vector<16x128xf32>
    %112 = arith.maximumf %110, %111 : vector<16x128xf32>
    %c1_110 = arith.constant 1 : index
    %c0_111 = arith.constant 0 : index
    %113 = vector.load %arg14[%c1_110, %c0_111] : memref<18x128xf32, #tpu.memory_space<vmem>>, vector<16x128xf32>
    tpu.vector_store %arg14[%c1_110, %c0_111], %112 {strides = array<i32>} : memref<18x128xf32, #tpu.memory_space<vmem>>, vector<16x128xf32>,
    %cst_112 = arith.constant 0.000000e+00 : f32
    %114 = vector.broadcast %cst_112 : f32 to vector<16x128xf32>
    %c0_113 = arith.constant 0 : index
    %c0_114 = arith.constant 0 : index
    %115 = vector.load %arg14[%c0_113, %c0_114] : memref<18x128xf32, #tpu.memory_space<vmem>>, vector<16x128xf32>
    %c0_115 = arith.constant 0 : index
    %c0_116 = arith.constant 0 : index
    %c0_117 = arith.constant 0 : index
    %116 = vector.load %arg8[%c0_115, %c0_116, %c0_117] : memref<3x128x128xf32, #tpu.memory_space<vmem>>, vector<1x128x128xf32>
    %117 = vector.shape_cast %116 : vector<1x128x128xf32> to vector<128x128xf32>
    %cst_118 = arith.constant dense<0.000000e+00> : vector<16x128xf32>
    %118 = tpu.matmul %115, %117, %cst_118 {dimension_numbers = #tpu.dot_dimension_numbers<[1], [0], [0], [1], [0, 0, 1, 1], [], []>} : vector<16x128xf32>, vector<128x128xf32>, vector<16x128xf32> -> vector<16x128xf32>
    %119 = arith.addf %114, %118 : vector<16x128xf32>
    %c1_119 = arith.constant 1 : index
    %c0_120 = arith.constant 0 : index
    %120 = vector.load %arg14[%c1_119, %c0_120] : memref<18x128xf32, #tpu.memory_space<vmem>>, vector<16x128xf32>
    %c1_121 = arith.constant 1 : index
    %c0_122 = arith.constant 0 : index
    %c0_123 = arith.constant 0 : index
    %121 = vector.load %arg8[%c1_121, %c0_122, %c0_123] : memref<3x128x128xf32, #tpu.memory_space<vmem>>, vector<1x128x128xf32>
    %122 = vector.shape_cast %121 : vector<1x128x128xf32> to vector<128x128xf32>
    %cst_124 = arith.constant dense<0.000000e+00> : vector<16x128xf32>
    %123 = tpu.matmul %120, %122, %cst_124 {dimension_numbers = #tpu.dot_dimension_numbers<[1], [0], [0], [1], [0, 0, 1, 1], [], []>} : vector<16x128xf32>, vector<128x128xf32>, vector<16x128xf32> -> vector<16x128xf32>
    %124 = arith.addf %119, %123 : vector<16x128xf32>
    %c2_125 = arith.constant 2 : index
    %c0_126 = arith.constant 0 : index
    %125 = vector.load %arg14[%c2_125, %c0_126] : memref<18x128xf32, #tpu.memory_space<vmem>>, vector<16x128xf32>
    %c2_127 = arith.constant 2 : index
    %c0_128 = arith.constant 0 : index
    %c0_129 = arith.constant 0 : index
    %126 = vector.load %arg8[%c2_127, %c0_128, %c0_129] : memref<3x128x128xf32, #tpu.memory_space<vmem>>, vector<1x128x128xf32>
    %127 = vector.shape_cast %126 : vector<1x128x128xf32> to vector<128x128xf32>
    %cst_130 = arith.constant dense<0.000000e+00> : vector<16x128xf32>
    %128 = tpu.matmul %125, %127, %cst_130 {dimension_numbers = #tpu.dot_dimension_numbers<[1], [0], [0], [1], [0, 0, 1, 1], [], []>} : vector<16x128xf32>, vector<128x128xf32>, vector<16x128xf32> -> vector<16x128xf32>
    %129 = arith.addf %124, %128 : vector<16x128xf32>
    %c0_131 = arith.constant 0 : index
    %c0_132 = arith.constant 0 : index
    %130 = vector.load %arg9[%c0_131, %c0_132] : memref<1x128xf32, #tpu.memory_space<vmem>>, vector<1x128xf32>
    %131 = vector.broadcast %130 : vector<1x128xf32> to vector<16x128xf32>
    %132 = arith.addf %129, %131 : vector<16x128xf32>
    %c0_133 = arith.constant 0 : index
    %c0_134 = arith.constant 0 : index
    %133 = vector.load %arg10[%c0_133, %c0_134] : memref<64x128xf32, #tpu.memory_space<vmem>>, vector<64x128xf32>
    %cst_135 = arith.constant dense<0.000000e+00> : vector<16x128xf32>
    %134 = tpu.matmul %76, %133, %cst_135 {dimension_numbers = #tpu.dot_dimension_numbers<[1], [0], [0], [1], [0, 0, 1, 1], [], []>} : vector<16x64xf32>, vector<64x128xf32>, vector<16x128xf32> -> vector<16x128xf32>
    %c0_136 = arith.constant 0 : index
    %c0_137 = arith.constant 0 : index
    %135 = vector.load %arg11[%c0_136, %c0_137] : memref<1x128xf32, #tpu.memory_space<vmem>>, vector<1x128xf32>
    %136 = vector.broadcast %135 : vector<1x128xf32> to vector<16x128xf32>
    %137 = arith.addf %134, %136 : vector<16x128xf32>
    %138 = arith.addf %132, %137 : vector<16x128xf32>
    %c1_138 = arith.constant 1 : index
    %c0_139 = arith.constant 0 : index
    %c0_140 = arith.constant 0 : index
    %139 = vector.load %arg12[%c1_138, %c0_139, %c0_140] : memref<2x16x128xf32, #tpu.memory_space<vmem>>, vector<1x16x128xf32>
    %140 = vector.shape_cast %139 : vector<1x16x128xf32> to vector<16x128xf32>
    %141 = vector.shape_cast %138 : vector<16x128xf32> to vector<1x16x128xf32>
    tpu.vector_store %arg12[%c1_138, %c0_139, %c0_140], %141 {strides = array<i32>} : memref<2x16x128xf32, #tpu.memory_space<vmem>>, vector<1x16x128xf32>,
    return
  }
  func.func @transform_0(%arg0: i32) -> (i32, i32, i32) {
    %c0_i32 = arith.constant 0 : i32
    %c0_i32_0 = arith.constant 0 : i32
    %c0_i32_1 = arith.constant 0 : i32
    return %arg0, %c0_i32, %c0_i32_0 : i32, i32, i32
  }
  func.func @transform_1(%arg0: i32) -> (i32, i32) {
    %c0_i32 = arith.constant 0 : i32
    %c0_i32_0 = arith.constant 0 : i32
    %c0_i32_1 = arith.constant 0 : i32
    return %c0_i32, %c0_i32_0 : i32, i32
  }
  func.func @transform_2(%arg0: i32) -> (i32, i32) {
    %c0_i32 = arith.constant 0 : i32
    %c0_i32_0 = arith.constant 0 : i32
    %c0_i32_1 = arith.constant 0 : i32
    return %c0_i32, %c0_i32_0 : i32, i32
  }
  func.func @transform_3(%arg0: i32) -> (i32, i32, i32) {
    %c0_i32 = arith.constant 0 : i32
    %c0_i32_0 = arith.constant 0 : i32
    %c0_i32_1 = arith.constant 0 : i32
    %c0_i32_2 = arith.constant 0 : i32
    return %c0_i32, %c0_i32_0, %c0_i32_1 : i32, i32, i32
  }
  func.func @transform_4(%arg0: i32) -> (i32, i32) {
    %c0_i32 = arith.constant 0 : i32
    %c0_i32_0 = arith.constant 0 : i32
    %c0_i32_1 = arith.constant 0 : i32
    return %c0_i32, %c0_i32_0 : i32, i32
  }
  func.func @transform_5(%arg0: i32) -> (i32, i32) {
    %c0_i32 = arith.constant 0 : i32
    %c0_i32_0 = arith.constant 0 : i32
    %c0_i32_1 = arith.constant 0 : i32
    return %c0_i32, %c0_i32_0 : i32, i32
  }
  func.func @transform_6(%arg0: i32) -> (i32, i32) {
    %c0_i32 = arith.constant 0 : i32
    %c0_i32_0 = arith.constant 0 : i32
    %c0_i32_1 = arith.constant 0 : i32
    return %c0_i32, %c0_i32_0 : i32, i32
  }
  func.func @transform_7(%arg0: i32) -> (i32, i32, i32) {
    %c0_i32 = arith.constant 0 : i32
    %c0_i32_0 = arith.constant 0 : i32
    %c0_i32_1 = arith.constant 0 : i32
    %c0_i32_2 = arith.constant 0 : i32
    return %c0_i32, %c0_i32_0, %c0_i32_1 : i32, i32, i32
  }
  func.func @transform_8(%arg0: i32) -> (i32, i32) {
    %c0_i32 = arith.constant 0 : i32
    %c0_i32_0 = arith.constant 0 : i32
    %c0_i32_1 = arith.constant 0 : i32
    return %c0_i32, %c0_i32_0 : i32, i32
  }
  func.func @transform_9(%arg0: i32) -> (i32, i32) {
    %c0_i32 = arith.constant 0 : i32
    %c0_i32_0 = arith.constant 0 : i32
    %c0_i32_1 = arith.constant 0 : i32
    return %c0_i32, %c0_i32_0 : i32, i32
  }
  func.func @transform_10(%arg0: i32) -> (i32, i32) {
    %c0_i32 = arith.constant 0 : i32
    %c0_i32_0 = arith.constant 0 : i32
    %c0_i32_1 = arith.constant 0 : i32
    return %c0_i32, %c0_i32_0 : i32, i32
  }
  func.func @transform_11(%arg0: i32) -> (i32, i32, i32) {
    %c0_i32 = arith.constant 0 : i32
    %c0_i32_0 = arith.constant 0 : i32
    %c0_i32_1 = arith.constant 0 : i32
    return %arg0, %c0_i32, %c0_i32_0 : i32, i32, i32
  }
}

</mosaic_0001>

<llo_original>
// kernel: tpu_custom_call.1
$region0: #{tpu_custom_call.1}
  #allocation0 [shape = 'u32[]', space=smem, size = 0x4, offset = 0x4, fixed_abs, tag = 'smem constant byte address 0x4 - core index']
  #allocation1 [shape = 'u32[144,128]{1,0:T(1,128)}', space=vmem, size = 0x12000, scoped, tag = 'internal scratch']
  #allocation2 [shape = 'f32[18,64]{1,0:T(8,128)}', space=vmem, size = 0x3000, scoped, tag = 'scratch operand']
  #allocation3 [shape = 'f32[18,128]{1,0:T(8,128)}', space=vmem, size = 0x3000, scoped, tag = 'scratch operand']
  %s0 = inlined_call_operand.hbm [shape: f32[2,16,64], index: 0, kind: input, shape index: {}]
  %s1 = inlined_call_operand.vmem [shape: f32[1,64], index: 1, kind: input, shape index: {}]
  %s2 = inlined_call_operand.vmem [shape: f32[1,64], index: 2, kind: input, shape index: {}]
  %s3 = inlined_call_operand.hbm [shape: f32[3,64,128], index: 3, kind: input, shape index: {}]
  %s4 = inlined_call_operand.vmem [shape: f32[1,128], index: 4, kind: input, shape index: {}]
  %s5 = inlined_call_operand.vmem [shape: f32[1,128], index: 5, kind: input, shape index: {}]
  %s6 = inlined_call_operand.vmem [shape: f32[1,128], index: 6, kind: input, shape index: {}]
  %s7 = inlined_call_operand.hbm [shape: f32[3,128,128], index: 7, kind: input, shape index: {}]
  %s8 = inlined_call_operand.vmem [shape: f32[1,128], index: 8, kind: input, shape index: {}]
  %s9 = inlined_call_operand.hbm [shape: f32[64,128], index: 9, kind: input, shape index: {}]
  %s10 = inlined_call_operand.vmem [shape: f32[1,128], index: 10, kind: input, shape index: {}]
  %s11 = inlined_call_operand.hbm [shape: f32[2,16,128], index: 11, kind: output, shape index: {}]
  %s12 = sld [smem:[#allocation0]]
  $region70: #{tpu_custom_call.1} parent=0
    _
  %s14 = ssub.s32 1, %s12
  %s15 = scalar_select 0, %s14, %s12
  $region1: #{tpu_custom_call.1} parent=0
    #allocation4 [shape = 'u8[16384]{0}', space=vmem, size = 0x4000, scoped, tag = 'input window, operand 0, single buffered']
    #allocation5 [shape = 's32[1]{0}', space=sflag, size = 0x4, scoped, tag = 'scoped memory for tpu_custom_call.1']
    #allocation6 [shape = 's32[1]{0}', space=sflag, size = 0x4, scoped, tag = 'scoped memory for tpu_custom_call.1']
    #allocation7 [shape = 'u8[98304]{0}', space=vmem, size = 0x18000, scoped, tag = 'input window, operand 3, single buffered']
    #allocation8 [shape = 's32[1]{0}', space=sflag, size = 0x4, scoped, tag = 'scoped memory for tpu_custom_call.1']
    #allocation9 [shape = 'u8[196608]{0}', space=vmem, size = 0x30000, scoped, tag = 'input window, operand 7, single buffered']
    #allocation10 [shape = 'u8[32768]{0}', space=vmem, size = 0x8000, scoped, tag = 'input window, operand 9, single buffered']
    #allocation11 [shape = 's32[1]{0}', space=sflag, size = 0x4, scoped, tag = 'scoped memory for tpu_custom_call.1']
    #allocation12 [shape = 'u8[16384]{0}', space=vmem, size = 0x4000, scoped, tag = 'output window, operand 0, single buffered']
    %16 = vsyncpa [#allocation5], 0
    %17 = vsyncpa [#allocation8], 0
    %18 = vsyncpa [#allocation11], 0
    %19 = vsyncpa [#allocation6], 0
    // Predicated region
    $region2: #{tpu_custom_call.1} parent=1 // pred_check
      _
    $region3: #{tpu_custom_call.1} parent=1 // pred_check_branch
      %21 = sbr.rel (0) target = $region5
    $region4: #{tpu_custom_call.1} parent=1 // pred_region
      %s23 = ssub.s32 512, 512
      %24 = vsyncadd [#allocation5], %s23
      %s25 = sshll.u32 [#allocation4], 4
      %s26 = int_to_ptr.vmem [resolvable:$true] %s25
      %31 = dma.hbm_to_vmem [thread:$0]  %s0, 512, %s26, [#allocation5], 128, 128, 8
    $region5: #{tpu_custom_call.1} parent=1 // pred_fallthru
      _
    // Predicated region
    $region6: #{tpu_custom_call.1} parent=1 // pred_check
      _
    $region7: #{tpu_custom_call.1} parent=1 // pred_check_branch
      %33 = sbr.rel (0) target = $region9
    $region8: #{tpu_custom_call.1} parent=1 // pred_region
      _
    $region9: #{tpu_custom_call.1} parent=1 // pred_fallthru
      _
    // Predicated region
    $region10: #{tpu_custom_call.1} parent=1 // pred_check
      _
    $region11: #{tpu_custom_call.1} parent=1 // pred_check_branch
      %35 = sbr.rel (0) target = $region13
    $region12: #{tpu_custom_call.1} parent=1 // pred_region
      _
    $region13: #{tpu_custom_call.1} parent=1 // pred_fallthru
      _
    // Predicated region
    $region14: #{tpu_custom_call.1} parent=1 // pred_check
      _
    $region15: #{tpu_custom_call.1} parent=1 // pred_check_branch
      %37 = sbr.rel (0) target = $region17
    $region16: #{tpu_custom_call.1} parent=1 // pred_region
      %s39 = ssub.s32 3072, 3072
      %40 = vsyncadd [#allocation8], %s39
      %s41 = sshll.u32 [#allocation7], 4
      %s42 = int_to_ptr.vmem [resolvable:$true] %s41
      %47 = dma.hbm_to_vmem [thread:$0]  %s3, 3072, %s42, [#allocation8], 128, 128, 8
    $region17: #{tpu_custom_call.1} parent=1 // pred_fallthru
      _
    // Predicated region
    $region18: #{tpu_custom_call.1} parent=1 // pred_check
      _
    $region19: #{tpu_custom_call.1} parent=1 // pred_check_branch
      %49 = sbr.rel (0) target = $region21
    $region20: #{tpu_custom_call.1} parent=1 // pred_region
      _
    $region21: #{tpu_custom_call.1} parent=1 // pred_fallthru
      _
    // Predicated region
    $region22: #{tpu_custom_call.1} parent=1 // pred_check
      _
    $region23: #{tpu_custom_call.1} parent=1 // pred_check_branch
      %51 = sbr.rel (0) target = $region25
    $region24: #{tpu_custom_call.1} parent=1 // pred_region
      _
    $region25: #{tpu_custom_call.1} parent=1 // pred_fallthru
      _
    // Predicated region
    $region26: #{tpu_custom_call.1} parent=1 // pred_check
      _
    $region27: #{tpu_custom_call.1} parent=1 // pred_check_branch
      %53 = sbr.rel (0) target = $region29
    $region28: #{tpu_custom_call.1} parent=1 // pred_region
      _
    $region29: #{tpu_custom_call.1} parent=1 // pred_fallthru
      _
    // Predicated region
    $region30: #{tpu_custom_call.1} parent=1 // pred_check
      _
    $region31: #{tpu_custom_call.1} parent=1 // pred_check_branch
      %55 = sbr.rel (0) target = $region33
    $region32: #{tpu_custom_call.1} parent=1 // pred_region
      %s57 = ssub.s32 6144, 6144
      %58 = vsyncadd [#allocation8], %s57
      %s59 = sshll.u32 [#allocation9], 4
      %s60 = int_to_ptr.vmem [resolvable:$true] %s59
      %65 = dma.hbm_to_vmem [thread:$0]  %s7, 6144, %s60, [#allocation8], 128, 128, 8
    $region33: #{tpu_custom_call.1} parent=1 // pred_fallthru
      _
    // Predicated region
    $region34: #{tpu_custom_call.1} parent=1 // pred_check
      _
    $region35: #{tpu_custom_call.1} parent=1 // pred_check_branch
      %67 = sbr.rel (0) target = $region37
    $region36: #{tpu_custom_call.1} parent=1 // pred_region
      _
    $region37: #{tpu_custom_call.1} parent=1 // pred_fallthru
      _
    // Predicated region
    $region38: #{tpu_custom_call.1} parent=1 // pred_check
      _
    $region39: #{tpu_custom_call.1} parent=1 // pred_check_branch
      %69 = sbr.rel (0) target = $region41
    $region40: #{tpu_custom_call.1} parent=1 // pred_region
      %s71 = ssub.s32 1024, 1024
      %72 = vsyncadd [#allocation11], %s71
      %s73 = sshll.u32 [#allocation10], 4
      %s74 = int_to_ptr.vmem [resolvable:$true] %s73
      %79 = dma.hbm_to_vmem [thread:$0]  %s9, 1024, %s74, [#allocation11], 128, 128, 8
    $region41: #{tpu_custom_call.1} parent=1 // pred_fallthru
      _
    // Predicated region
    $region42: #{tpu_custom_call.1} parent=1 // pred_check
      _
    $region43: #{tpu_custom_call.1} parent=1 // pred_check_branch
      %81 = sbr.rel (0) target = $region45
    $region44: #{tpu_custom_call.1} parent=1 // pred_region
      _
    $region45: #{tpu_custom_call.1} parent=1 // pred_fallthru
      _
    // Predicated region
    $region46: #{tpu_custom_call.1} parent=1 // pred_check
      _
    $region47: #{tpu_custom_call.1} parent=1 // pred_check_branch
      %83 = sbr.rel (0) target = $region49
    $region48: #{tpu_custom_call.1} parent=1 // pred_region
      %84 = dma.done [#allocation5], 512
    $region49: #{tpu_custom_call.1} parent=1 // pred_fallthru
      _
    // Predicated region
    $region50: #{tpu_custom_call.1} parent=1 // pred_check
      _
    $region51: #{tpu_custom_call.1} parent=1 // pred_check_branch
      %86 = sbr.rel (0) target = $region53
    $region52: #{tpu_custom_call.1} parent=1 // pred_region
      %87 = dma.done [#allocation8], 3072
    $region53: #{tpu_custom_call.1} parent=1 // pred_fallthru
      _
    // Predicated region
    $region54: #{tpu_custom_call.1} parent=1 // pred_check
      _
    $region55: #{tpu_custom_call.1} parent=1 // pred_check_branch
      %89 = sbr.rel (0) target = $region57
    $region56: #{tpu_custom_call.1} parent=1 // pred_region
      %90 = dma.done [#allocation8], 6144
    $region57: #{tpu_custom_call.1} parent=1 // pred_fallthru
      _
    // Predicated region
    $region58: #{tpu_custom_call.1} parent=1 // pred_check
      _
    $region59: #{tpu_custom_call.1} parent=1 // pred_check_branch
      %92 = sbr.rel (0) target = $region61
    $region60: #{tpu_custom_call.1} parent=1 // pred_region
      %93 = dma.done [#allocation11], 1024
    $region61: #{tpu_custom_call.1} parent=1 // pred_fallthru
      _
    %vm94 = vcmask 516096
    %95 = vst.msk [vmem:[#allocation2] sm:$0x1] %vm94, 0.0
    %96 = vst.msk [vmem:[#allocation2 + $0x11] sm:$0x1] %vm94, 0.0
    %97 = vst [vmem:[#allocation3] sm:$0x1] 0.0
    %98 = vst [vmem:[#allocation3 + $0x11] sm:$0x1] 0.0
    %v99 = vld [vmem:[#allocation4] sm:$0xff]
    %v100 = vld [vmem:[#allocation4 + $0x8] sm:$0xff]
    %v101 = vld [vmem:[%s1] sm:$0x1]
    %v103 = vlaneseq
    %v104 = vshrl.u32 %v103, 7
    %v105 = vsub.s32 0, %v104
    %v106 = vrot.slane %v101, %v105
    %v108 = vmul.f32 %v99, %v106
    %v109 = vmul.f32 %v100, %v106
    %v110 = vld [vmem:[%s2] sm:$0x1]
    %v112 = vlaneseq
    %v113 = vshrl.u32 %v112, 7
    %v114 = vsub.s32 0, %v113
    %v115 = vrot.slane %v110, %v114
    %v117 = vadd.f32 %v108, %v115
    %v118 = vadd.f32 %v109, %v115
    %v119 = vmax.f32 %v117, 0.0
    %v120 = vmax.f32 %v118, 0.0
    %vm121 = vcmask 523264
    %122 = vst.msk [vmem:[#allocation2 + $0x1] sm:$0xff] %vm121, %v119
    %123 = vst.msk [vmem:[#allocation2 + $0x9] sm:$0xff] %vm121, %v120
    %v124 = vld [vmem:[#allocation2] sm:$0xff]
    %v125 = vld [vmem:[#allocation2 + $0x8] sm:$0xff]
    %v126 = vld [vmem:[#allocation7] sm:$0xff]
    %v127 = vld [vmem:[#allocation7 + $0x8] sm:$0xff]
    %v128 = vld [vmem:[#allocation7 + $0x10] sm:$0xff]
    %v129 = vld [vmem:[#allocation7 + $0x18] sm:$0xff]
    %v130 = vld [vmem:[#allocation7 + $0x20] sm:$0xff]
    %v131 = vld [vmem:[#allocation7 + $0x28] sm:$0xff]
    %v132 = vld [vmem:[#allocation7 + $0x30] sm:$0xff]
    %v133 = vld [vmem:[#allocation7 + $0x38] sm:$0xff]
    %v134 = vld [vmem:[#allocation2 + $0x1] sm:$0xff]
    %v135 = vld [vmem:[#allocation2 + $0x9] sm:$0xff]
    %s136 = scalar_lea.vmem [#allocation7], 64
    %v137 = vld [vmem:[%s136] sm:$0xff]
    %v138 = vld [vmem:[%s136 + $0x8] sm:$0xff]
    %v139 = vld [vmem:[%s136 + $0x10] sm:$0xff]
    %v140 = vld [vmem:[%s136 + $0x18] sm:$0xff]
    %v141 = vld [vmem:[%s136 + $0x20] sm:$0xff]
    %v142 = vld [vmem:[%s136 + $0x28] sm:$0xff]
    %v143 = vld [vmem:[%s136 + $0x30] sm:$0xff]
    %v144 = vld [vmem:[%s136 + $0x38] sm:$0xff]
    %v146 = vsel %vm121, %v134, 0
    %v149 = vsel %vm121, %v135, 0
    %151 = vmatprep.subr.mxu0 0.0
    %152 = vmatpush1.msra.mxu0 0.0
    %153 = vmatprep.subr.mxu0 0.0
    %154 = vmatpush1.msra.mxu0 0.0
    %155 = vmatprep.subr.mxu0 0.0
    %156 = vmatpush1.msra.mxu0 0.0
    %157 = vmatprep.subr.mxu0 0.0
    %158 = vmatpush1.msra.mxu0 0.0
    %159 = vmatprep.subr.mxu0 0.0
    %160 = vmatpush1.msra.mxu0 0.0
    %161 = vmatprep.subr.mxu0 0.0
    %162 = vmatpush1.msra.mxu0 0.0
    %163 = vmatprep.subr.mxu0 0.0
    %164 = vmatpush1.msra.mxu0 0.0
    %165 = vmatprep.subr.mxu0 0.0
    %166 = vmatpush1.msra.mxu0 0.0
    %167 = vmatprep.subr.mxu0 0.0
    %168 = vmatpush1.msra.mxu0 %v144
    %169 = vmatprep.subr.mxu0 0.0
    %170 = vmatpush1.msra.mxu0 %v143
    %171 = vmatprep.subr.mxu0 0.0
    %172 = vmatpush1.msra.mxu0 %v142
    %173 = vmatprep.subr.mxu0 0.0
    %174 = vmatpush1.msra.mxu0 %v141
    %175 = vmatprep.subr.mxu0 0.0
    %176 = vmatpush1.msra.mxu0 %v140
    %177 = vmatprep.subr.mxu0 0.0
    %178 = vmatpush1.msra.mxu0 %v139
    %179 = vmatprep.subr.mxu0 0.0
    %180 = vmatpush1.msra.mxu0 %v138
    %181 = vmatprep.subr.mxu0 0.0
    %182 = vmatpush1.msra.mxu0 %v137
    %183 = vmatprep.subr.mxu0 0.0
    %184 = vmatpush2.msra.mxu0 0.0
    %185 = vmatprep.subr.mxu0 0.0
    %186 = vmatpush2.msra.mxu0 0.0
    %187 = vmatprep.subr.mxu0 0.0
    %188 = vmatpush2.msra.mxu0 0.0
    %189 = vmatprep.subr.mxu0 0.0
    %190 = vmatpush2.msra.mxu0 0.0
    %191 = vmatprep.subr.mxu0 0.0
    %192 = vmatpush2.msra.mxu0 0.0
    %193 = vmatprep.subr.mxu0 0.0
    %194 = vmatpush2.msra.mxu0 0.0
    %195 = vmatprep.subr.mxu0 0.0
    %196 = vmatpush2.msra.mxu0 0.0
    %197 = vmatprep.subr.mxu0 0.0
    %198 = vmatpush2.msra.mxu0 0.0
    %199 = vmatprep.subr.mxu0 0.0
    %200 = vmatpush2.msra.mxu0 0.0
    %201 = vmatprep.subr.mxu0 0.0
    %202 = vmatpush2.msra.mxu0 0.0
    %203 = vmatprep.subr.mxu0 0.0
    %204 = vmatpush2.msra.mxu0 0.0
    %205 = vmatprep.subr.mxu0 0.0
    %206 = vmatpush2.msra.mxu0 0.0
    %207 = vmatprep.subr.mxu0 0.0
    %208 = vmatpush2.msra.mxu0 0.0
    %209 = vmatprep.subr.mxu0 0.0
    %210 = vmatpush2.msra.mxu0 0.0
    %211 = vmatprep.subr.mxu0 0.0
    %212 = vmatpush2.msra.mxu0 0.0
    %213 = vmatprep.subr.mxu0 0.0
    %214 = vmatpush2.msra.mxu0 0.0
    %215 = vmatprep.mubr.f32.mxu0 0.0
    %216 = vmatmul.mubr.f32.gmra.mxu0 %v146
    %v217 = vpop.f32.mrf.mxu0
    %v218 = vadd.f32 0.0, %v217
    %v219 = vpop.f32.mrf.mxu0
    %220 = vmatprep.mubr.f32.mxu0 0.0
    %221 = vmatmul.mubr.f32.gmra.mxu0 %v149
    %v222 = vpop.f32.mrf.mxu0
    %v223 = vadd.f32 0.0, %v222
    %v224 = vpop.f32.mrf.mxu0
    %225 = vdwg.mxu0
    %v227 = vsel %vm121, %v124, 0
    %v230 = vsel %vm121, %v125, 0
    %232 = vmatprep.subr.mxu0 0.0
    %233 = vmatpush1.msra.mxu0 0.0
    %234 = vmatprep.subr.mxu0 0.0
    %235 = vmatpush1.msra.mxu0 0.0
    %236 = vmatprep.subr.mxu0 0.0
    %237 = vmatpush1.msra.mxu0 0.0
    %238 = vmatprep.subr.mxu0 0.0
    %239 = vmatpush1.msra.mxu0 0.0
    %240 = vmatprep.subr.mxu0 0.0
    %241 = vmatpush1.msra.mxu0 0.0
    %242 = vmatprep.subr.mxu0 0.0
    %243 = vmatpush1.msra.mxu0 0.0
    %244 = vmatprep.subr.mxu0 0.0
    %245 = vmatpush1.msra.mxu0 0.0
    %246 = vmatprep.subr.mxu0 0.0
    %247 = vmatpush1.msra.mxu0 0.0
    %248 = vmatprep.subr.mxu0 0.0
    %249 = vmatpush1.msra.mxu0 %v133
    %250 = vmatprep.subr.mxu0 0.0
    %251 = vmatpush1.msra.mxu0 %v132
    %252 = vmatprep.subr.mxu0 0.0
    %253 = vmatpush1.msra.mxu0 %v131
    %254 = vmatprep.subr.mxu0 0.0
    %255 = vmatpush1.msra.mxu0 %v130
    %256 = vmatprep.subr.mxu0 0.0
    %257 = vmatpush1.msra.mxu0 %v129
    %258 = vmatprep.subr.mxu0 0.0
    %259 = vmatpush1.msra.mxu0 %v128
    %260 = vmatprep.subr.mxu0 0.0
    %261 = vmatpush1.msra.mxu0 %v127
    %262 = vmatprep.subr.mxu0 0.0
    %263 = vmatpush1.msra.mxu0 %v126
    %264 = vmatprep.subr.mxu0 0.0
    %265 = vmatpush2.msra.mxu0 0.0
    %266 = vmatprep.subr.mxu0 0.0
    %267 = vmatpush2.msra.mxu0 0.0
    %268 = vmatprep.subr.mxu0 0.0
    %269 = vmatpush2.msra.mxu0 0.0
    %270 = vmatprep.subr.mxu0 0.0
    %271 = vmatpush2.msra.mxu0 0.0
    %272 = vmatprep.subr.mxu0 0.0
    %273 = vmatpush2.msra.mxu0 0.0
    %274 = vmatprep.subr.mxu0 0.0
    %275 = vmatpush2.msra.mxu0 0.0
    %276 = vmatprep.subr.mxu0 0.0
    %277 = vmatpush2.msra.mxu0 0.0
    %278 = vmatprep.subr.mxu0 0.0
    %279 = vmatpush2.msra.mxu0 0.0
    %280 = vmatprep.subr.mxu0 0.0
    %281 = vmatpush2.msra.mxu0 0.0
    %282 = vmatprep.subr.mxu0 0.0
    %283 = vmatpush2.msra.mxu0 0.0
    %284 = vmatprep.subr.mxu0 0.0
    %285 = vmatpush2.msra.mxu0 0.0
    %286 = vmatprep.subr.mxu0 0.0
    %287 = vmatpush2.msra.mxu0 0.0
    %288 = vmatprep.subr.mxu0 0.0
    %289 = vmatpush2.msra.mxu0 0.0
    %290 = vmatprep.subr.mxu0 0.0
    %291 = vmatpush2.msra.mxu0 0.0
    %292 = vmatprep.subr.mxu0 0.0
    %293 = vmatpush2.msra.mxu0 0.0
    %294 = vmatprep.subr.mxu0 0.0
    %295 = vmatpush2.msra.mxu0 0.0
    %296 = vmatprep.mubr.f32.mxu0 0.0
    %297 = vmatmul.mubr.f32.gmra.mxu0 %v227
    %v298 = vpop.f32.mrf.mxu0
    %v299 = vadd.f32 %v218, %v298
    %v300 = vpop.f32.mrf.mxu0
    %301 = vmatprep.mubr.f32.mxu0 0.0
    %302 = vmatmul.mubr.f32.gmra.mxu0 %v230
    %v303 = vpop.f32.mrf.mxu0
    %v304 = vadd.f32 %v223, %v303
    %v305 = vpop.f32.mrf.mxu0
    %306 = vdwg.mxu0
    %v307 = vld [vmem:[#allocation2 + $0x2] sm:$0xff]
    %v308 = vld [vmem:[#allocation2 + $0xa] sm:$0xff]
    %s309 = scalar_lea.vmem [#allocation7], 128
    %v310 = vld [vmem:[%s309] sm:$0xff]
    %v311 = vld [vmem:[%s309 + $0x8] sm:$0xff]
    %v312 = vld [vmem:[%s309 + $0x10] sm:$0xff]
    %v313 = vld [vmem:[%s309 + $0x18] sm:$0xff]
    %v314 = vld [vmem:[%s309 + $0x20] sm:$0xff]
    %v315 = vld [vmem:[%s309 + $0x28] sm:$0xff]
    %v316 = vld [vmem:[%s309 + $0x30] sm:$0xff]
    %v317 = vld [vmem:[%s309 + $0x38] sm:$0xff]
    %v319 = vsel %vm121, %v307, 0
    %v322 = vsel %vm121, %v308, 0
    %324 = vmatprep.subr.mxu0 0.0
    %325 = vmatpush1.msra.mxu0 0.0
    %326 = vmatprep.subr.mxu0 0.0
    %327 = vmatpush1.msra.mxu0 0.0
    %328 = vmatprep.subr.mxu0 0.0
    %329 = vmatpush1.msra.mxu0 0.0
    %330 = vmatprep.subr.mxu0 0.0
    %331 = vmatpush1.msra.mxu0 0.0
    %332 = vmatprep.subr.mxu0 0.0
    %333 = vmatpush1.msra.mxu0 0.0
    %334 = vmatprep.subr.mxu0 0.0
    %335 = vmatpush1.msra.mxu0 0.0
    %336 = vmatprep.subr.mxu0 0.0
    %337 = vmatpush1.msra.mxu0 0.0
    %338 = vmatprep.subr.mxu0 0.0
    %339 = vmatpush1.msra.mxu0 0.0
    %340 = vmatprep.subr.mxu0 0.0
    %341 = vmatpush1.msra.mxu0 %v317
    %342 = vmatprep.subr.mxu0 0.0
    %343 = vmatpush1.msra.mxu0 %v316
    %344 = vmatprep.subr.mxu0 0.0
    %345 = vmatpush1.msra.mxu0 %v315
    %346 = vmatprep.subr.mxu0 0.0
    %347 = vmatpush1.msra.mxu0 %v314
    %348 = vmatprep.subr.mxu0 0.0
    %349 = vmatpush1.msra.mxu0 %v313
    %350 = vmatprep.subr.mxu0 0.0
    %351 = vmatpush1.msra.mxu0 %v312
    %352 = vmatprep.subr.mxu0 0.0
    %353 = vmatpush1.msra.mxu0 %v311
    %354 = vmatprep.subr.mxu0 0.0
    %355 = vmatpush1.msra.mxu0 %v310
    %356 = vmatprep.subr.mxu0 0.0
    %357 = vmatpush2.msra.mxu0 0.0
    %358 = vmatprep.subr.mxu0 0.0
    %359 = vmatpush2.msra.mxu0 0.0
    %360 = vmatprep.subr.mxu0 0.0
    %361 = vmatpush2.msra.mxu0 0.0
    %362 = vmatprep.subr.mxu0 0.0
    %363 = vmatpush2.msra.mxu0 0.0
    %364 = vmatprep.subr.mxu0 0.0
    %365 = vmatpush2.msra.mxu0 0.0
    %366 = vmatprep.subr.mxu0 0.0
    %367 = vmatpush2.msra.mxu0 0.0
    %368 = vmatprep.subr.mxu0 0.0
    %369 = vmatpush2.msra.mxu0 0.0
    %370 = vmatprep.subr.mxu0 0.0
    %371 = vmatpush2.msra.mxu0 0.0
    %372 = vmatprep.subr.mxu0 0.0
    %373 = vmatpush2.msra.mxu0 0.0
    %374 = vmatprep.subr.mxu0 0.0
    %375 = vmatpush2.msra.mxu0 0.0
    %376 = vmatprep.subr.mxu0 0.0
    %377 = vmatpush2.msra.mxu0 0.0
    %378 = vmatprep.subr.mxu0 0.0
    %379 = vmatpush2.msra.mxu0 0.0
    %380 = vmatprep.subr.mxu0 0.0
    %381 = vmatpush2.msra.mxu0 0.0
    %382 = vmatprep.subr.mxu0 0.0
    %383 = vmatpush2.msra.mxu0 0.0
    %384 = vmatprep.subr.mxu0 0.0
    %385 = vmatpush2.msra.mxu0 0.0
    %386 = vmatprep.subr.mxu0 0.0
    %387 = vmatpush2.msra.mxu0 0.0
    %388 = vmatprep.mubr.f32.mxu0 0.0
    %389 = vmatmul.mubr.f32.gmra.mxu0 %v319
    %v390 = vpop.f32.mrf.mxu0
    %v391 = vadd.f32 0.0, %v390
    %v392 = vpop.f32.mrf.mxu0
    %393 = vmatprep.mubr.f32.mxu0 0.0
    %394 = vmatmul.mubr.f32.gmra.mxu0 %v322
    %v395 = vpop.f32.mrf.mxu0
    %v396 = vadd.f32 0.0, %v395
    %v397 = vpop.f32.mrf.mxu0
    %398 = vdwg.mxu0
    %v399 = vadd.f32 %v299, %v391
    %v400 = vadd.f32 %v304, %v396
    %v401 = vld [vmem:[%s4] sm:$0x1]
    %v403 = vlaneseq
    %v404 = vshrl.u32 %v403, 7
    %v405 = vsub.s32 0, %v404
    %v406 = vrot.slane %v401, %v405
    %v408 = vadd.f32 %v399, %v406
    %v409 = vadd.f32 %v400, %v406
    %v410 = vld [vmem:[%s5] sm:$0x1]
    %v412 = vlaneseq
    %v413 = vshrl.u32 %v412, 7
    %v414 = vsub.s32 0, %v413
    %v415 = vrot.slane %v410, %v414
    %v417 = vmul.f32 %v408, %v415
    %v418 = vmul.f32 %v409, %v415
    %v419 = vld [vmem:[%s6] sm:$0x1]
    %v421 = vlaneseq
    %v422 = vshrl.u32 %v421, 7
    %v423 = vsub.s32 0, %v422
    %v424 = vrot.slane %v419, %v423
    %v426 = vadd.f32 %v417, %v424
    %v427 = vadd.f32 %v418, %v424
    %v428 = vmax.f32 %v426, 0.0
    %v429 = vmax.f32 %v427, 0.0
    %430 = vst [vmem:[#allocation3 + $0x1] sm:$0xff] %v428
    %431 = vst [vmem:[#allocation3 + $0x9] sm:$0xff] %v429
    %v432 = vld [vmem:[#allocation3] sm:$0xff]
    %v433 = vld [vmem:[#allocation3 + $0x8] sm:$0xff]
    %v434 = vld [vmem:[#allocation9] sm:$0xff]
    %v435 = vld [vmem:[#allocation9 + $0x8] sm:$0xff]
    %v436 = vld [vmem:[#allocation9 + $0x10] sm:$0xff]
    %v437 = vld [vmem:[#allocation9 + $0x18] sm:$0xff]
    %v438 = vld [vmem:[#allocation9 + $0x20] sm:$0xff]
    %v439 = vld [vmem:[#allocation9 + $0x28] sm:$0xff]
    %v440 = vld [vmem:[#allocation9 + $0x30] sm:$0xff]
    %v441 = vld [vmem:[#allocation9 + $0x38] sm:$0xff]
    %v442 = vld [vmem:[#allocation9 + $0x40] sm:$0xff]
    %v443 = vld [vmem:[#allocation9 + $0x48] sm:$0xff]
    %v444 = vld [vmem:[#allocation9 + $0x50] sm:$0xff]
    %v445 = vld [vmem:[#allocation9 + $0x58] sm:$0xff]
    %v446 = vld [vmem:[#allocation9 + $0x60] sm:$0xff]
    %v447 = vld [vmem:[#allocation9 + $0x68] sm:$0xff]
    %v448 = vld [vmem:[#allocation9 + $0x70] sm:$0xff]
    %v449 = vld [vmem:[#allocation9 + $0x78] sm:$0xff]
    %v450 = vld [vmem:[#allocation3 + $0x1] sm:$0xff]
    %v451 = vld [vmem:[#allocation3 + $0x9] sm:$0xff]
    %s452 = scalar_lea.vmem [#allocation9], 128
    %v453 = vld [vmem:[%s452] sm:$0xff]
    %v454 = vld [vmem:[%s452 + $0x8] sm:$0xff]
    %v455 = vld [vmem:[%s452 + $0x10] sm:$0xff]
    %v456 = vld [vmem:[%s452 + $0x18] sm:$0xff]
    %v457 = vld [vmem:[%s452 + $0x20] sm:$0xff]
    %v458 = vld [vmem:[%s452 + $0x28] sm:$0xff]
    %v459 = vld [vmem:[%s452 + $0x30] sm:$0xff]
    %v460 = vld [vmem:[%s452 + $0x38] sm:$0xff]
    %v461 = vld [vmem:[%s452 + $0x40] sm:$0xff]
    %v462 = vld [vmem:[%s452 + $0x48] sm:$0xff]
    %v463 = vld [vmem:[%s452 + $0x50] sm:$0xff]
    %v464 = vld [vmem:[%s452 + $0x58] sm:$0xff]
    %v465 = vld [vmem:[%s452 + $0x60] sm:$0xff]
    %v466 = vld [vmem:[%s452 + $0x68] sm:$0xff]
    %v467 = vld [vmem:[%s452 + $0x70] sm:$0xff]
    %v468 = vld [vmem:[%s452 + $0x78] sm:$0xff]
    %469 = vmatprep.subr.mxu0 0.0
    %470 = vmatpush1.msra.mxu0 %v468
    %471 = vmatprep.subr.mxu0 0.0
    %472 = vmatpush1.msra.mxu0 %v467
    %473 = vmatprep.subr.mxu0 0.0
    %474 = vmatpush1.msra.mxu0 %v466
    %475 = vmatprep.subr.mxu0 0.0
    %476 = vmatpush1.msra.mxu0 %v465
    %477 = vmatprep.subr.mxu0 0.0
    %478 = vmatpush1.msra.mxu0 %v464
    %479 = vmatprep.subr.mxu0 0.0
    %480 = vmatpush1.msra.mxu0 %v463
    %481 = vmatprep.subr.mxu0 0.0
    %482 = vmatpush1.msra.mxu0 %v462
    %483 = vmatprep.subr.mxu0 0.0
    %484 = vmatpush1.msra.mxu0 %v461
    %485 = vmatprep.subr.mxu0 0.0
    %486 = vmatpush1.msra.mxu0 %v460
    %487 = vmatprep.subr.mxu0 0.0
    %488 = vmatpush1.msra.mxu0 %v459
    %489 = vmatprep.subr.mxu0 0.0
    %490 = vmatpush1.msra.mxu0 %v458
    %491 = vmatprep.subr.mxu0 0.0
    %492 = vmatpush1.msra.mxu0 %v457
    %493 = vmatprep.subr.mxu0 0.0
    %494 = vmatpush1.msra.mxu0 %v456
    %495 = vmatprep.subr.mxu0 0.0
    %496 = vmatpush1.msra.mxu0 %v455
    %497 = vmatprep.subr.mxu0 0.0
    %498 = vmatpush1.msra.mxu0 %v454
    %499 = vmatprep.subr.mxu0 0.0
    %500 = vmatpush1.msra.mxu0 %v453
    %501 = vmatprep.subr.mxu0 0.0
    %502 = vmatpush2.msra.mxu0 0.0
    %503 = vmatprep.subr.mxu0 0.0
    %504 = vmatpush2.msra.mxu0 0.0
    %505 = vmatprep.subr.mxu0 0.0
    %506 = vmatpush2.msra.mxu0 0.0
    %507 = vmatprep.subr.mxu0 0.0
    %508 = vmatpush2.msra.mxu0 0.0
    %509 = vmatprep.subr.mxu0 0.0
    %510 = vmatpush2.msra.mxu0 0.0
    %511 = vmatprep.subr.mxu0 0.0
    %512 = vmatpush2.msra.mxu0 0.0
    %513 = vmatprep.subr.mxu0 0.0
    %514 = vmatpush2.msra.mxu0 0.0
    %515 = vmatprep.subr.mxu0 0.0
    %516 = vmatpush2.msra.mxu0 0.0
    %517 = vmatprep.subr.mxu0 0.0
    %518 = vmatpush2.msra.mxu0 0.0
    %519 = vmatprep.subr.mxu0 0.0
    %520 = vmatpush2.msra.mxu0 0.0
    %521 = vmatprep.subr.mxu0 0.0
    %522 = vmatpush2.msra.mxu0 0.0
    %523 = vmatprep.subr.mxu0 0.0
    %524 = vmatpush2.msra.mxu0 0.0
    %525 = vmatprep.subr.mxu0 0.0
    %526 = vmatpush2.msra.mxu0 0.0
    %527 = vmatprep.subr.mxu0 0.0
    %528 = vmatpush2.msra.mxu0 0.0
    %529 = vmatprep.subr.mxu0 0.0
    %530 = vmatpush2.msra.mxu0 0.0
    %531 = vmatprep.subr.mxu0 0.0
    %532 = vmatpush2.msra.mxu0 0.0
    %533 = vmatprep.mubr.f32.mxu0 0.0
    %534 = vmatmul.mubr.f32.gmra.mxu0 %v450
    %v535 = vpop.f32.mrf.mxu0
    %v536 = vadd.f32 0.0, %v535
    %v537 = vpop.f32.mrf.mxu0
    %538 = vmatprep.mubr.f32.mxu0 0.0
    %539 = vmatmul.mubr.f32.gmra.mxu0 %v451
    %v540 = vpop.f32.mrf.mxu0
    %v541 = vadd.f32 0.0, %v540
    %v542 = vpop.f32.mrf.mxu0
    %543 = vdwg.mxu0
    %544 = vmatprep.subr.mxu0 0.0
    %545 = vmatpush1.msra.mxu0 %v449
    %546 = vmatprep.subr.mxu0 0.0
    %547 = vmatpush1.msra.mxu0 %v448
    %548 = vmatprep.subr.mxu0 0.0
    %549 = vmatpush1.msra.mxu0 %v447
    %550 = vmatprep.subr.mxu0 0.0
    %551 = vmatpush1.msra.mxu0 %v446
    %552 = vmatprep.subr.mxu0 0.0
    %553 = vmatpush1.msra.mxu0 %v445
    %554 = vmatprep.subr.mxu0 0.0
    %555 = vmatpush1.msra.mxu0 %v444
    %556 = vmatprep.subr.mxu0 0.0
    %557 = vmatpush1.msra.mxu0 %v443
    %558 = vmatprep.subr.mxu0 0.0
    %559 = vmatpush1.msra.mxu0 %v442
    %560 = vmatprep.subr.mxu0 0.0
    %561 = vmatpush1.msra.mxu0 %v441
    %562 = vmatprep.subr.mxu0 0.0
    %563 = vmatpush1.msra.mxu0 %v440
    %564 = vmatprep.subr.mxu0 0.0
    %565 = vmatpush1.msra.mxu0 %v439
    %566 = vmatprep.subr.mxu0 0.0
    %567 = vmatpush1.msra.mxu0 %v438
    %568 = vmatprep.subr.mxu0 0.0
    %569 = vmatpush1.msra.mxu0 %v437
    %570 = vmatprep.subr.mxu0 0.0
    %571 = vmatpush1.msra.mxu0 %v436
    %572 = vmatprep.subr.mxu0 0.0
    %573 = vmatpush1.msra.mxu0 %v435
    %574 = vmatprep.subr.mxu0 0.0
    %575 = vmatpush1.msra.mxu0 %v434
    %576 = vmatprep.subr.mxu0 0.0
    %577 = vmatpush2.msra.mxu0 0.0
    %578 = vmatprep.subr.mxu0 0.0
    %579 = vmatpush2.msra.mxu0 0.0
    %580 = vmatprep.subr.mxu0 0.0
    %581 = vmatpush2.msra.mxu0 0.0
    %582 = vmatprep.subr.mxu0 0.0
    %583 = vmatpush2.msra.mxu0 0.0
    %584 = vmatprep.subr.mxu0 0.0
    %585 = vmatpush2.msra.mxu0 0.0
    %586 = vmatprep.subr.mxu0 0.0
    %587 = vmatpush2.msra.mxu0 0.0
    %588 = vmatprep.subr.mxu0 0.0
    %589 = vmatpush2.msra.mxu0 0.0
    %590 = vmatprep.subr.mxu0 0.0
    %591 = vmatpush2.msra.mxu0 0.0
    %592 = vmatprep.subr.mxu0 0.0
    %593 = vmatpush2.msra.mxu0 0.0
    %594 = vmatprep.subr.mxu0 0.0
    %595 = vmatpush2.msra.mxu0 0.0
    %596 = vmatprep.subr.mxu0 0.0
    %597 = vmatpush2.msra.mxu0 0.0
    %598 = vmatprep.subr.mxu0 0.0
    %599 = vmatpush2.msra.mxu0 0.0
    %600 = vmatprep.subr.mxu0 0.0
    %601 = vmatpush2.msra.mxu0 0.0
    %602 = vmatprep.subr.mxu0 0.0
    %603 = vmatpush2.msra.mxu0 0.0
    %604 = vmatprep.subr.mxu0 0.0
    %605 = vmatpush2.msra.mxu0 0.0
    %606 = vmatprep.subr.mxu0 0.0
    %607 = vmatpush2.msra.mxu0 0.0
    %608 = vmatprep.mubr.f32.mxu0 0.0
    %609 = vmatmul.mubr.f32.gmra.mxu0 %v432
    %v610 = vpop.f32.mrf.mxu0
    %v611 = vadd.f32 %v536, %v610
    %v612 = vpop.f32.mrf.mxu0
    %613 = vmatprep.mubr.f32.mxu0 0.0
    %614 = vmatmul.mubr.f32.gmra.mxu0 %v433
    %v615 = vpop.f32.mrf.mxu0
    %v616 = vadd.f32 %v541, %v615
    %v617 = vpop.f32.mrf.mxu0
    %618 = vdwg.mxu0
    %v619 = vld [vmem:[#allocation3 + $0x2] sm:$0xff]
    %v620 = vld [vmem:[#allocation3 + $0xa] sm:$0xff]
    %s621 = scalar_lea.vmem [#allocation9], 256
    %v622 = vld [vmem:[%s621] sm:$0xff]
    %v623 = vld [vmem:[%s621 + $0x8] sm:$0xff]
    %v624 = vld [vmem:[%s621 + $0x10] sm:$0xff]
    %v625 = vld [vmem:[%s621 + $0x18] sm:$0xff]
    %v626 = vld [vmem:[%s621 + $0x20] sm:$0xff]
    %v627 = vld [vmem:[%s621 + $0x28] sm:$0xff]
    %v628 = vld [vmem:[%s621 + $0x30] sm:$0xff]
    %v629 = vld [vmem:[%s621 + $0x38] sm:$0xff]
    %v630 = vld [vmem:[%s621 + $0x40] sm:$0xff]
    %v631 = vld [vmem:[%s621 + $0x48] sm:$0xff]
    %v632 = vld [vmem:[%s621 + $0x50] sm:$0xff]
    %v633 = vld [vmem:[%s621 + $0x58] sm:$0xff]
    %v634 = vld [vmem:[%s621 + $0x60] sm:$0xff]
    %v635 = vld [vmem:[%s621 + $0x68] sm:$0xff]
    %v636 = vld [vmem:[%s621 + $0x70] sm:$0xff]
    %v637 = vld [vmem:[%s621 + $0x78] sm:$0xff]
    %638 = vmatprep.subr.mxu0 0.0
    %639 = vmatpush1.msra.mxu0 %v637
    %640 = vmatprep.subr.mxu0 0.0
    %641 = vmatpush1.msra.mxu0 %v636
    %642 = vmatprep.subr.mxu0 0.0
    %643 = vmatpush1.msra.mxu0 %v635
    %644 = vmatprep.subr.mxu0 0.0
    %645 = vmatpush1.msra.mxu0 %v634
    %646 = vmatprep.subr.mxu0 0.0
    %647 = vmatpush1.msra.mxu0 %v633
    %648 = vmatprep.subr.mxu0 0.0
    %649 = vmatpush1.msra.mxu0 %v632
    %650 = vmatprep.subr.mxu0 0.0
    %651 = vmatpush1.msra.mxu0 %v631
    %652 = vmatprep.subr.mxu0 0.0
    %653 = vmatpush1.msra.mxu0 %v630
    %654 = vmatprep.subr.mxu0 0.0
    %655 = vmatpush1.msra.mxu0 %v629
    %656 = vmatprep.subr.mxu0 0.0
    %657 = vmatpush1.msra.mxu0 %v628
    %658 = vmatprep.subr.mxu0 0.0
    %659 = vmatpush1.msra.mxu0 %v627
    %660 = vmatprep.subr.mxu0 0.0
    %661 = vmatpush1.msra.mxu0 %v626
    %662 = vmatprep.subr.mxu0 0.0
    %663 = vmatpush1.msra.mxu0 %v625
    %664 = vmatprep.subr.mxu0 0.0
    %665 = vmatpush1.msra.mxu0 %v624
    %666 = vmatprep.subr.mxu0 0.0
    %667 = vmatpush1.msra.mxu0 %v623
    %668 = vmatprep.subr.mxu0 0.0
    %669 = vmatpush1.msra.mxu0 %v622
    %670 = vmatprep.subr.mxu0 0.0
    %671 = vmatpush2.msra.mxu0 0.0
    %672 = vmatprep.subr.mxu0 0.0
    %673 = vmatpush2.msra.mxu0 0.0
    %674 = vmatprep.subr.mxu0 0.0
    %675 = vmatpush2.msra.mxu0 0.0
    %676 = vmatprep.subr.mxu0 0.0
    %677 = vmatpush2.msra.mxu0 0.0
    %678 = vmatprep.subr.mxu0 0.0
    %679 = vmatpush2.msra.mxu0 0.0
    %680 = vmatprep.subr.mxu0 0.0
    %681 = vmatpush2.msra.mxu0 0.0
    %682 = vmatprep.subr.mxu0 0.0
    %683 = vmatpush2.msra.mxu0 0.0
    %684 = vmatprep.subr.mxu0 0.0
    %685 = vmatpush2.msra.mxu0 0.0
    %686 = vmatprep.subr.mxu0 0.0
    %687 = vmatpush2.msra.mxu0 0.0
    %688 = vmatprep.subr.mxu0 0.0
    %689 = vmatpush2.msra.mxu0 0.0
    %690 = vmatprep.subr.mxu0 0.0
    %691 = vmatpush2.msra.mxu0 0.0
    %692 = vmatprep.subr.mxu0 0.0
    %693 = vmatpush2.msra.mxu0 0.0
    %694 = vmatprep.subr.mxu0 0.0
    %695 = vmatpush2.msra.mxu0 0.0
    %696 = vmatprep.subr.mxu0 0.0
    %697 = vmatpush2.msra.mxu0 0.0
    %698 = vmatprep.subr.mxu0 0.0
    %699 = vmatpush2.msra.mxu0 0.0
    %700 = vmatprep.subr.mxu0 0.0
    %701 = vmatpush2.msra.mxu0 0.0
    %702 = vmatprep.mubr.f32.mxu0 0.0
    %703 = vmatmul.mubr.f32.gmra.mxu0 %v619
    %v704 = vpop.f32.mrf.mxu0
    %v705 = vadd.f32 0.0, %v704
    %v706 = vpop.f32.mrf.mxu0
    %707 = vmatprep.mubr.f32.mxu0 0.0
    %708 = vmatmul.mubr.f32.gmra.mxu0 %v620
    %v709 = vpop.f32.mrf.mxu0
    %v710 = vadd.f32 0.0, %v709
    %v711 = vpop.f32.mrf.mxu0
    %712 = vdwg.mxu0
    %v713 = vadd.f32 %v611, %v705
    %v714 = vadd.f32 %v616, %v710
    %v715 = vld [vmem:[%s8] sm:$0x1]
    %v717 = vlaneseq
    %v718 = vshrl.u32 %v717, 7
    %v719 = vsub.s32 0, %v718
    %v720 = vrot.slane %v715, %v719
    %v722 = vadd.f32 %v713, %v720
    %v723 = vadd.f32 %v714, %v720
    %v724 = vld [vmem:[#allocation10] sm:$0xff]
    %v725 = vld [vmem:[#allocation10 + $0x8] sm:$0xff]
    %v726 = vld [vmem:[#allocation10 + $0x10] sm:$0xff]
    %v727 = vld [vmem:[#allocation10 + $0x18] sm:$0xff]
    %v728 = vld [vmem:[#allocation10 + $0x20] sm:$0xff]
    %v729 = vld [vmem:[#allocation10 + $0x28] sm:$0xff]
    %v730 = vld [vmem:[#allocation10 + $0x30] sm:$0xff]
    %v731 = vld [vmem:[#allocation10 + $0x38] sm:$0xff]
    %v732 = vld [vmem:[%s10] sm:$0x1]
    %v734 = vlaneseq
    %v735 = vshrl.u32 %v734, 7
    %v736 = vsub.s32 0, %v735
    %v737 = vrot.slane %v732, %v736
    %v740 = vsel %vm121, %v99, 0
    %v743 = vsel %vm121, %v100, 0
    %745 = vmatprep.subr.mxu0 0.0
    %746 = vmatpush1.msra.mxu0 0.0
    %747 = vmatprep.subr.mxu0 0.0
    %748 = vmatpush1.msra.mxu0 0.0
    %749 = vmatprep.subr.mxu0 0.0
    %750 = vmatpush1.msra.mxu0 0.0
    %751 = vmatprep.subr.mxu0 0.0
    %752 = vmatpush1.msra.mxu0 0.0
    %753 = vmatprep.subr.mxu0 0.0
    %754 = vmatpush1.msra.mxu0 0.0
    %755 = vmatprep.subr.mxu0 0.0
    %756 = vmatpush1.msra.mxu0 0.0
    %757 = vmatprep.subr.mxu0 0.0
    %758 = vmatpush1.msra.mxu0 0.0
    %759 = vmatprep.subr.mxu0 0.0
    %760 = vmatpush1.msra.mxu0 0.0
    %761 = vmatprep.subr.mxu0 0.0
    %762 = vmatpush1.msra.mxu0 %v731
    %763 = vmatprep.subr.mxu0 0.0
    %764 = vmatpush1.msra.mxu0 %v730
    %765 = vmatprep.subr.mxu0 0.0
    %766 = vmatpush1.msra.mxu0 %v729
    %767 = vmatprep.subr.mxu0 0.0
    %768 = vmatpush1.msra.mxu0 %v728
    %769 = vmatprep.subr.mxu0 0.0
    %770 = vmatpush1.msra.mxu0 %v727
    %771 = vmatprep.subr.mxu0 0.0
    %772 = vmatpush1.msra.mxu0 %v726
    %773 = vmatprep.subr.mxu0 0.0
    %774 = vmatpush1.msra.mxu0 %v725
    %775 = vmatprep.subr.mxu0 0.0
    %776 = vmatpush1.msra.mxu0 %v724
    %777 = vmatprep.subr.mxu0 0.0
    %778 = vmatpush2.msra.mxu0 0.0
    %779 = vmatprep.subr.mxu0 0.0
    %780 = vmatpush2.msra.mxu0 0.0
    %781 = vmatprep.subr.mxu0 0.0
    %782 = vmatpush2.msra.mxu0 0.0
    %783 = vmatprep.subr.mxu0 0.0
    %784 = vmatpush2.msra.mxu0 0.0
    %785 = vmatprep.subr.mxu0 0.0
    %786 = vmatpush2.msra.mxu0 0.0
    %787 = vmatprep.subr.mxu0 0.0
    %788 = vmatpush2.msra.mxu0 0.0
    %789 = vmatprep.subr.mxu0 0.0
    %790 = vmatpush2.msra.mxu0 0.0
    %791 = vmatprep.subr.mxu0 0.0
    %792 = vmatpush2.msra.mxu0 0.0
    %793 = vmatprep.subr.mxu0 0.0
    %794 = vmatpush2.msra.mxu0 0.0
    %795 = vmatprep.subr.mxu0 0.0
    %796 = vmatpush2.msra.mxu0 0.0
    %797 = vmatprep.subr.mxu0 0.0
    %798 = vmatpush2.msra.mxu0 0.0
    %799 = vmatprep.subr.mxu0 0.0
    %800 = vmatpush2.msra.mxu0 0.0
    %801 = vmatprep.subr.mxu0 0.0
    %802 = vmatpush2.msra.mxu0 0.0
    %803 = vmatprep.subr.mxu0 0.0
    %804 = vmatpush2.msra.mxu0 0.0
    %805 = vmatprep.subr.mxu0 0.0
    %806 = vmatpush2.msra.mxu0 0.0
    %807 = vmatprep.subr.mxu0 0.0
    %808 = vmatpush2.msra.mxu0 0.0
    %809 = vmatprep.mubr.f32.mxu0 0.0
    %810 = vmatmul.mubr.f32.gmra.mxu0 %v740
    %v811 = vpop.f32.mrf.mxu0
    %v812 = vadd.f32 %v737, %v811
    %v813 = vpop.f32.mrf.mxu0
    %814 = vmatprep.mubr.f32.mxu0 0.0
    %815 = vmatmul.mubr.f32.gmra.mxu0 %v743
    %v816 = vpop.f32.mrf.mxu0
    %v817 = vadd.f32 %v737, %v816
    %v818 = vpop.f32.mrf.mxu0
    %819 = vdwg.mxu0
    %v820 = vadd.f32 %v722, %v812
    %v821 = vadd.f32 %v723, %v817
    %822 = vst [vmem:[#allocation12] sm:$0xff] %v820
    %823 = vst [vmem:[#allocation12 + $0x8] sm:$0xff] %v821
    %s824 = scalar_lea.vmem [#allocation4], 16
    %v825 = vld [vmem:[%s824] sm:$0xff]
    %v826 = vld [vmem:[%s824 + $0x8] sm:$0xff]
    %v827 = vld [vmem:[%s1] sm:$0x1]
    %v829 = vlaneseq
    %v830 = vshrl.u32 %v829, 7
    %v831 = vsub.s32 0, %v830
    %v832 = vrot.slane %v827, %v831
    %v834 = vmul.f32 %v825, %v832
    %v835 = vmul.f32 %v826, %v832
    %v836 = vld [vmem:[%s2] sm:$0x1]
    %v838 = vlaneseq
    %v839 = vshrl.u32 %v838, 7
    %v840 = vsub.s32 0, %v839
    %v841 = vrot.slane %v836, %v840
    %v843 = vadd.f32 %v834, %v841
    %v844 = vadd.f32 %v835, %v841
    %v845 = vmax.f32 %v843, 0.0
    %v846 = vmax.f32 %v844, 0.0
    %847 = vst.msk [vmem:[#allocation2 + $0x1] sm:$0xff] %vm121, %v845
    %848 = vst.msk [vmem:[#allocation2 + $0x9] sm:$0xff] %vm121, %v846
    %v849 = vld [vmem:[#allocation2] sm:$0xff]
    %v850 = vld [vmem:[#allocation2 + $0x8] sm:$0xff]
    %v851 = vld [vmem:[#allocation7] sm:$0xff]
    %v852 = vld [vmem:[#allocation7 + $0x8] sm:$0xff]
    %v853 = vld [vmem:[#allocation7 + $0x10] sm:$0xff]
    %v854 = vld [vmem:[#allocation7 + $0x18] sm:$0xff]
    %v855 = vld [vmem:[#allocation7 + $0x20] sm:$0xff]
    %v856 = vld [vmem:[#allocation7 + $0x28] sm:$0xff]
    %v857 = vld [vmem:[#allocation7 + $0x30] sm:$0xff]
    %v858 = vld [vmem:[#allocation7 + $0x38] sm:$0xff]
    %v859 = vld [vmem:[#allocation2 + $0x1] sm:$0xff]
    %v860 = vld [vmem:[#allocation2 + $0x9] sm:$0xff]
    %v861 = vld [vmem:[%s136] sm:$0xff]
    %v862 = vld [vmem:[%s136 + $0x8] sm:$0xff]
    %v863 = vld [vmem:[%s136 + $0x10] sm:$0xff]
    %v864 = vld [vmem:[%s136 + $0x18] sm:$0xff]
    %v865 = vld [vmem:[%s136 + $0x20] sm:$0xff]
    %v866 = vld [vmem:[%s136 + $0x28] sm:$0xff]
    %v867 = vld [vmem:[%s136 + $0x30] sm:$0xff]
    %v868 = vld [vmem:[%s136 + $0x38] sm:$0xff]
    %v870 = vsel %vm121, %v859, 0
    %v873 = vsel %vm121, %v860, 0
    %875 = vmatprep.subr.mxu0 0.0
    %876 = vmatpush1.msra.mxu0 0.0
    %877 = vmatprep.subr.mxu0 0.0
    %878 = vmatpush1.msra.mxu0 0.0
    %879 = vmatprep.subr.mxu0 0.0
    %880 = vmatpush1.msra.mxu0 0.0
    %881 = vmatprep.subr.mxu0 0.0
    %882 = vmatpush1.msra.mxu0 0.0
    %883 = vmatprep.subr.mxu0 0.0
    %884 = vmatpush1.msra.mxu0 0.0
    %885 = vmatprep.subr.mxu0 0.0
    %886 = vmatpush1.msra.mxu0 0.0
    %887 = vmatprep.subr.mxu0 0.0
    %888 = vmatpush1.msra.mxu0 0.0
    %889 = vmatprep.subr.mxu0 0.0
    %890 = vmatpush1.msra.mxu0 0.0
    %891 = vmatprep.subr.mxu0 0.0
    %892 = vmatpush1.msra.mxu0 %v868
    %893 = vmatprep.subr.mxu0 0.0
    %894 = vmatpush1.msra.mxu0 %v867
    %895 = vmatprep.subr.mxu0 0.0
    %896 = vmatpush1.msra.mxu0 %v866
    %897 = vmatprep.subr.mxu0 0.0
    %898 = vmatpush1.msra.mxu0 %v865
    %899 = vmatprep.subr.mxu0 0.0
    %900 = vmatpush1.msra.mxu0 %v864
    %901 = vmatprep.subr.mxu0 0.0
    %902 = vmatpush1.msra.mxu0 %v863
    %903 = vmatprep.subr.mxu0 0.0
    %904 = vmatpush1.msra.mxu0 %v862
    %905 = vmatprep.subr.mxu0 0.0
    %906 = vmatpush1.msra.mxu0 %v861
    %907 = vmatprep.subr.mxu0 0.0
    %908 = vmatpush2.msra.mxu0 0.0
    %909 = vmatprep.subr.mxu0 0.0
    %910 = vmatpush2.msra.mxu0 0.0
    %911 = vmatprep.subr.mxu0 0.0
    %912 = vmatpush2.msra.mxu0 0.0
    %913 = vmatprep.subr.mxu0 0.0
    %914 = vmatpush2.msra.mxu0 0.0
    %915 = vmatprep.subr.mxu0 0.0
    %916 = vmatpush2.msra.mxu0 0.0
    %917 = vmatprep.subr.mxu0 0.0
    %918 = vmatpush2.msra.mxu0 0.0
    %919 = vmatprep.subr.mxu0 0.0
    %920 = vmatpush2.msra.mxu0 0.0
    %921 = vmatprep.subr.mxu0 0.0
    %922 = vmatpush2.msra.mxu0 0.0
    %923 = vmatprep.subr.mxu0 0.0
    %924 = vmatpush2.msra.mxu0 0.0
    %925 = vmatprep.subr.mxu0 0.0
    %926 = vmatpush2.msra.mxu0 0.0
    %927 = vmatprep.subr.mxu0 0.0
    %928 = vmatpush2.msra.mxu0 0.0
    %929 = vmatprep.subr.mxu0 0.0
    %930 = vmatpush2.msra.mxu0 0.0
    %931 = vmatprep.subr.mxu0 0.0
    %932 = vmatpush2.msra.mxu0 0.0
    %933 = vmatprep.subr.mxu0 0.0
    %934 = vmatpush2.msra.mxu0 0.0
    %935 = vmatprep.subr.mxu0 0.0
    %936 = vmatpush2.msra.mxu0 0.0
    %937 = vmatprep.subr.mxu0 0.0
    %938 = vmatpush2.msra.mxu0 0.0
    %939 = vmatprep.mubr.f32.mxu0 0.0
    %940 = vmatmul.mubr.f32.gmra.mxu0 %v870
    %v941 = vpop.f32.mrf.mxu0
    %v942 = vadd.f32 0.0, %v941
    %v943 = vpop.f32.mrf.mxu0
    %944 = vmatprep.mubr.f32.mxu0 0.0
    %945 = vmatmul.mubr.f32.gmra.mxu0 %v873
    %v946 = vpop.f32.mrf.mxu0
    %v947 = vadd.f32 0.0, %v946
    %v948 = vpop.f32.mrf.mxu0
    %949 = vdwg.mxu0
    %v951 = vsel %vm121, %v849, 0
    %v954 = vsel %vm121, %v850, 0
    %956 = vmatprep.subr.mxu0 0.0
    %957 = vmatpush1.msra.mxu0 0.0
    %958 = vmatprep.subr.mxu0 0.0
    %959 = vmatpush1.msra.mxu0 0.0
    %960 = vmatprep.subr.mxu0 0.0
    %961 = vmatpush1.msra.mxu0 0.0
    %962 = vmatprep.subr.mxu0 0.0
    %963 = vmatpush1.msra.mxu0 0.0
    %964 = vmatprep.subr.mxu0 0.0
    %965 = vmatpush1.msra.mxu0 0.0
    %966 = vmatprep.subr.mxu0 0.0
    %967 = vmatpush1.msra.mxu0 0.0
    %968 = vmatprep.subr.mxu0 0.0
    %969 = vmatpush1.msra.mxu0 0.0
    %970 = vmatprep.subr.mxu0 0.0
    %971 = vmatpush1.msra.mxu0 0.0
    %972 = vmatprep.subr.mxu0 0.0
    %973 = vmatpush1.msra.mxu0 %v858
    %974 = vmatprep.subr.mxu0 0.0
    %975 = vmatpush1.msra.mxu0 %v857
    %976 = vmatprep.subr.mxu0 0.0
    %977 = vmatpush1.msra.mxu0 %v856
    %978 = vmatprep.subr.mxu0 0.0
    %979 = vmatpush1.msra.mxu0 %v855
    %980 = vmatprep.subr.mxu0 0.0
    %981 = vmatpush1.msra.mxu0 %v854
    %982 = vmatprep.subr.mxu0 0.0
    %983 = vmatpush1.msra.mxu0 %v853
    %984 = vmatprep.subr.mxu0 0.0
    %985 = vmatpush1.msra.mxu0 %v852
    %986 = vmatprep.subr.mxu0 0.0
    %987 = vmatpush1.msra.mxu0 %v851
    %988 = vmatprep.subr.mxu0 0.0
    %989 = vmatpush2.msra.mxu0 0.0
    %990 = vmatprep.subr.mxu0 0.0
    %991 = vmatpush2.msra.mxu0 0.0
    %992 = vmatprep.subr.mxu0 0.0
    %993 = vmatpush2.msra.mxu0 0.0
    %994 = vmatprep.subr.mxu0 0.0
    %995 = vmatpush2.msra.mxu0 0.0
    %996 = vmatprep.subr.mxu0 0.0
    %997 = vmatpush2.msra.mxu0 0.0
    %998 = vmatprep.subr.mxu0 0.0
    %999 = vmatpush2.msra.mxu0 0.0
    %1000 = vmatprep.subr.mxu0 0.0
    %1001 = vmatpush2.msra.mxu0 0.0
    %1002 = vmatprep.subr.mxu0 0.0
    %1003 = vmatpush2.msra.mxu0 0.0
    %1004 = vmatprep.subr.mxu0 0.0
    %1005 = vmatpush2.msra.mxu0 0.0
    %1006 = vmatprep.subr.mxu0 0.0
    %1007 = vmatpush2.msra.mxu0 0.0
    %1008 = vmatprep.subr.mxu0 0.0
    %1009 = vmatpush2.msra.mxu0 0.0
    %1010 = vmatprep.subr.mxu0 0.0
    %1011 = vmatpush2.msra.mxu0 0.0
    %1012 = vmatprep.subr.mxu0 0.0
    %1013 = vmatpush2.msra.mxu0 0.0
    %1014 = vmatprep.subr.mxu0 0.0
    %1015 = vmatpush2.msra.mxu0 0.0
    %1016 = vmatprep.subr.mxu0 0.0
    %1017 = vmatpush2.msra.mxu0 0.0
    %1018 = vmatprep.subr.mxu0 0.0
    %1019 = vmatpush2.msra.mxu0 0.0
    %1020 = vmatprep.mubr.f32.mxu0 0.0
    %1021 = vmatmul.mubr.f32.gmra.mxu0 %v951
    %v1022 = vpop.f32.mrf.mxu0
    %v1023 = vadd.f32 %v942, %v1022
    %v1024 = vpop.f32.mrf.mxu0
    %1025 = vmatprep.mubr.f32.mxu0 0.0
    %1026 = vmatmul.mubr.f32.gmra.mxu0 %v954
    %v1027 = vpop.f32.mrf.mxu0
    %v1028 = vadd.f32 %v947, %v1027
    %v1029 = vpop.f32.mrf.mxu0
    %1030 = vdwg.mxu0
    %v1031 = vld [vmem:[#allocation2 + $0x2] sm:$0xff]
    %v1032 = vld [vmem:[#allocation2 + $0xa] sm:$0xff]
    %v1033 = vld [vmem:[%s309] sm:$0xff]
    %v1034 = vld [vmem:[%s309 + $0x8] sm:$0xff]
    %v1035 = vld [vmem:[%s309 + $0x10] sm:$0xff]
    %v1036 = vld [vmem:[%s309 + $0x18] sm:$0xff]
    %v1037 = vld [vmem:[%s309 + $0x20] sm:$0xff]
    %v1038 = vld [vmem:[%s309 + $0x28] sm:$0xff]
    %v1039 = vld [vmem:[%s309 + $0x30] sm:$0xff]
    %v1040 = vld [vmem:[%s309 + $0x38] sm:$0xff]
    %v1042 = vsel %vm121, %v1031, 0
    %v1045 = vsel %vm121, %v1032, 0
    %1047 = vmatprep.subr.mxu0 0.0
    %1048 = vmatpush1.msra.mxu0 0.0
    %1049 = vmatprep.subr.mxu0 0.0
    %1050 = vmatpush1.msra.mxu0 0.0
    %1051 = vmatprep.subr.mxu0 0.0
    %1052 = vmatpush1.msra.mxu0 0.0
    %1053 = vmatprep.subr.mxu0 0.0
    %1054 = vmatpush1.msra.mxu0 0.0
    %1055 = vmatprep.subr.mxu0 0.0
    %1056 = vmatpush1.msra.mxu0 0.0
    %1057 = vmatprep.subr.mxu0 0.0
    %1058 = vmatpush1.msra.mxu0 0.0
    %1059 = vmatprep.subr.mxu0 0.0
    %1060 = vmatpush1.msra.mxu0 0.0
    %1061 = vmatprep.subr.mxu0 0.0
    %1062 = vmatpush1.msra.mxu0 0.0
    %1063 = vmatprep.subr.mxu0 0.0
    %1064 = vmatpush1.msra.mxu0 %v1040
    %1065 = vmatprep.subr.mxu0 0.0
    %1066 = vmatpush1.msra.mxu0 %v1039
    %1067 = vmatprep.subr.mxu0 0.0
    %1068 = vmatpush1.msra.mxu0 %v1038
    %1069 = vmatprep.subr.mxu0 0.0
    %1070 = vmatpush1.msra.mxu0 %v1037
    %1071 = vmatprep.subr.mxu0 0.0
    %1072 = vmatpush1.msra.mxu0 %v1036
    %1073 = vmatprep.subr.mxu0 0.0
    %1074 = vmatpush1.msra.mxu0 %v1035
    %1075 = vmatprep.subr.mxu0 0.0
    %1076 = vmatpush1.msra.mxu0 %v1034
    %1077 = vmatprep.subr.mxu0 0.0
    %1078 = vmatpush1.msra.mxu0 %v1033
    %1079 = vmatprep.subr.mxu0 0.0
    %1080 = vmatpush2.msra.mxu0 0.0
    %1081 = vmatprep.subr.mxu0 0.0
    %1082 = vmatpush2.msra.mxu0 0.0
    %1083 = vmatprep.subr.mxu0 0.0
    %1084 = vmatpush2.msra.mxu0 0.0
    %1085 = vmatprep.subr.mxu0 0.0
    %1086 = vmatpush2.msra.mxu0 0.0
    %1087 = vmatprep.subr.mxu0 0.0
    %1088 = vmatpush2.msra.mxu0 0.0
    %1089 = vmatprep.subr.mxu0 0.0
    %1090 = vmatpush2.msra.mxu0 0.0
    %1091 = vmatprep.subr.mxu0 0.0
    %1092 = vmatpush2.msra.mxu0 0.0
    %1093 = vmatprep.subr.mxu0 0.0
    %1094 = vmatpush2.msra.mxu0 0.0
    %1095 = vmatprep.subr.mxu0 0.0
    %1096 = vmatpush2.msra.mxu0 0.0
    %1097 = vmatprep.subr.mxu0 0.0
    %1098 = vmatpush2.msra.mxu0 0.0
    %1099 = vmatprep.subr.mxu0 0.0
    %1100 = vmatpush2.msra.mxu0 0.0
    %1101 = vmatprep.subr.mxu0 0.0
    %1102 = vmatpush2.msra.mxu0 0.0
    %1103 = vmatprep.subr.mxu0 0.0
    %1104 = vmatpush2.msra.mxu0 0.0
    %1105 = vmatprep.subr.mxu0 0.0
    %1106 = vmatpush2.msra.mxu0 0.0
    %1107 = vmatprep.subr.mxu0 0.0
    %1108 = vmatpush2.msra.mxu0 0.0
    %1109 = vmatprep.subr.mxu0 0.0
    %1110 = vmatpush2.msra.mxu0 0.0
    %1111 = vmatprep.mubr.f32.mxu0 0.0
    %1112 = vmatmul.mubr.f32.gmra.mxu0 %v1042
    %v1113 = vpop.f32.mrf.mxu0
    %v1114 = vadd.f32 0.0, %v1113
    %v1115 = vpop.f32.mrf.mxu0
    %1116 = vmatprep.mubr.f32.mxu0 0.0
    %1117 = vmatmul.mubr.f32.gmra.mxu0 %v1045
    %v1118 = vpop.f32.mrf.mxu0
    %v1119 = vadd.f32 0.0, %v1118
    %v1120 = vpop.f32.mrf.mxu0
    %1121 = vdwg.mxu0
    %v1122 = vadd.f32 %v1023, %v1114
    %v1123 = vadd.f32 %v1028, %v1119
    %v1124 = vld [vmem:[%s4] sm:$0x1]
    %v1126 = vlaneseq
    %v1127 = vshrl.u32 %v1126, 7
    %v1128 = vsub.s32 0, %v1127
    %v1129 = vrot.slane %v1124, %v1128
    %v1131 = vadd.f32 %v1122, %v1129
    %v1132 = vadd.f32 %v1123, %v1129
    %v1133 = vld [vmem:[%s5] sm:$0x1]
    %v1135 = vlaneseq
    %v1136 = vshrl.u32 %v1135, 7
    %v1137 = vsub.s32 0, %v1136
    %v1138 = vrot.slane %v1133, %v1137
    %v1140 = vmul.f32 %v1131, %v1138
    %v1141 = vmul.f32 %v1132, %v1138
    %v1142 = vld [vmem:[%s6] sm:$0x1]
    %v1144 = vlaneseq
    %v1145 = vshrl.u32 %v1144, 7
    %v1146 = vsub.s32 0, %v1145
    %v1147 = vrot.slane %v1142, %v1146
    %v1149 = vadd.f32 %v1140, %v1147
    %v1150 = vadd.f32 %v1141, %v1147
    %v1151 = vmax.f32 %v1149, 0.0
    %v1152 = vmax.f32 %v1150, 0.0
    %1153 = vst [vmem:[#allocation3 + $0x1] sm:$0xff] %v1151
    %1154 = vst [vmem:[#allocation3 + $0x9] sm:$0xff] %v1152
    %v1155 = vld [vmem:[#allocation3] sm:$0xff]
    %v1156 = vld [vmem:[#allocation3 + $0x8] sm:$0xff]
    %v1157 = vld [vmem:[#allocation9] sm:$0xff]
    %v1158 = vld [vmem:[#allocation9 + $0x8] sm:$0xff]
    %v1159 = vld [vmem:[#allocation9 + $0x10] sm:$0xff]
    %v1160 = vld [vmem:[#allocation9 + $0x18] sm:$0xff]
    %v1161 = vld [vmem:[#allocation9 + $0x20] sm:$0xff]
    %v1162 = vld [vmem:[#allocation9 + $0x28] sm:$0xff]
    %v1163 = vld [vmem:[#allocation9 + $0x30] sm:$0xff]
    %v1164 = vld [vmem:[#allocation9 + $0x38] sm:$0xff]
    %v1165 = vld [vmem:[#allocation9 + $0x40] sm:$0xff]
    %v1166 = vld [vmem:[#allocation9 + $0x48] sm:$0xff]
    %v1167 = vld [vmem:[#allocation9 + $0x50] sm:$0xff]
    %v1168 = vld [vmem:[#allocation9 + $0x58] sm:$0xff]
    %v1169 = vld [vmem:[#allocation9 + $0x60] sm:$0xff]
    %v1170 = vld [vmem:[#allocation9 + $0x68] sm:$0xff]
    %v1171 = vld [vmem:[#allocation9 + $0x70] sm:$0xff]
    %v1172 = vld [vmem:[#allocation9 + $0x78] sm:$0xff]
    %v1173 = vld [vmem:[#allocation3 + $0x1] sm:$0xff]
    %v1174 = vld [vmem:[#allocation3 + $0x9] sm:$0xff]
    %v1175 = vld [vmem:[%s452] sm:$0xff]
    %v1176 = vld [vmem:[%s452 + $0x8] sm:$0xff]
    %v1177 = vld [vmem:[%s452 + $0x10] sm:$0xff]
    %v1178 = vld [vmem:[%s452 + $0x18] sm:$0xff]
    %v1179 = vld [vmem:[%s452 + $0x20] sm:$0xff]
    %v1180 = vld [vmem:[%s452 + $0x28] sm:$0xff]
    %v1181 = vld [vmem:[%s452 + $0x30] sm:$0xff]
    %v1182 = vld [vmem:[%s452 + $0x38] sm:$0xff]
    %v1183 = vld [vmem:[%s452 + $0x40] sm:$0xff]
    %v1184 = vld [vmem:[%s452 + $0x48] sm:$0xff]
    %v1185 = vld [vmem:[%s452 + $0x50] sm:$0xff]
    %v1186 = vld [vmem:[%s452 + $0x58] sm:$0xff]
    %v1187 = vld [vmem:[%s452 + $0x60] sm:$0xff]
    %v1188 = vld [vmem:[%s452 + $0x68] sm:$0xff]
    %v1189 = vld [vmem:[%s452 + $0x70] sm:$0xff]
    %v1190 = vld [vmem:[%s452 + $0x78] sm:$0xff]
    %1191 = vmatprep.subr.mxu0 0.0
    %1192 = vmatpush1.msra.mxu0 %v1190
    %1193 = vmatprep.subr.mxu0 0.0
    %1194 = vmatpush1.msra.mxu0 %v1189
    %1195 = vmatprep.subr.mxu0 0.0
    %1196 = vmatpush1.msra.mxu0 %v1188
    %1197 = vmatprep.subr.mxu0 0.0
    %1198 = vmatpush1.msra.mxu0 %v1187
    %1199 = vmatprep.subr.mxu0 0.0
    %1200 = vmatpush1.msra.mxu0 %v1186
    %1201 = vmatprep.subr.mxu0 0.0
    %1202 = vmatpush1.msra.mxu0 %v1185
    %1203 = vmatprep.subr.mxu0 0.0
    %1204 = vmatpush1.msra.mxu0 %v1184
    %1205 = vmatprep.subr.mxu0 0.0
    %1206 = vmatpush1.msra.mxu0 %v1183
    %1207 = vmatprep.subr.mxu0 0.0
    %1208 = vmatpush1.msra.mxu0 %v1182
    %1209 = vmatprep.subr.mxu0 0.0
    %1210 = vmatpush1.msra.mxu0 %v1181
    %1211 = vmatprep.subr.mxu0 0.0
    %1212 = vmatpush1.msra.mxu0 %v1180
    %1213 = vmatprep.subr.mxu0 0.0
    %1214 = vmatpush1.msra.mxu0 %v1179
    %1215 = vmatprep.subr.mxu0 0.0
    %1216 = vmatpush1.msra.mxu0 %v1178
    %1217 = vmatprep.subr.mxu0 0.0
    %1218 = vmatpush1.msra.mxu0 %v1177
    %1219 = vmatprep.subr.mxu0 0.0
    %1220 = vmatpush1.msra.mxu0 %v1176
    %1221 = vmatprep.subr.mxu0 0.0
    %1222 = vmatpush1.msra.mxu0 %v1175
    %1223 = vmatprep.subr.mxu0 0.0
    %1224 = vmatpush2.msra.mxu0 0.0
    %1225 = vmatprep.subr.mxu0 0.0
    %1226 = vmatpush2.msra.mxu0 0.0
    %1227 = vmatprep.subr.mxu0 0.0
    %1228 = vmatpush2.msra.mxu0 0.0
    %1229 = vmatprep.subr.mxu0 0.0
    %1230 = vmatpush2.msra.mxu0 0.0
    %1231 = vmatprep.subr.mxu0 0.0
    %1232 = vmatpush2.msra.mxu0 0.0
    %1233 = vmatprep.subr.mxu0 0.0
    %1234 = vmatpush2.msra.mxu0 0.0
    %1235 = vmatprep.subr.mxu0 0.0
    %1236 = vmatpush2.msra.mxu0 0.0
    %1237 = vmatprep.subr.mxu0 0.0
    %1238 = vmatpush2.msra.mxu0 0.0
    %1239 = vmatprep.subr.mxu0 0.0
    %1240 = vmatpush2.msra.mxu0 0.0
    %1241 = vmatprep.subr.mxu0 0.0
    %1242 = vmatpush2.msra.mxu0 0.0
    %1243 = vmatprep.subr.mxu0 0.0
    %1244 = vmatpush2.msra.mxu0 0.0
    %1245 = vmatprep.subr.mxu0 0.0
    %1246 = vmatpush2.msra.mxu0 0.0
    %1247 = vmatprep.subr.mxu0 0.0
    %1248 = vmatpush2.msra.mxu0 0.0
    %1249 = vmatprep.subr.mxu0 0.0
    %1250 = vmatpush2.msra.mxu0 0.0
    %1251 = vmatprep.subr.mxu0 0.0
    %1252 = vmatpush2.msra.mxu0 0.0
    %1253 = vmatprep.subr.mxu0 0.0
    %1254 = vmatpush2.msra.mxu0 0.0
    %1255 = vmatprep.mubr.f32.mxu0 0.0
    %1256 = vmatmul.mubr.f32.gmra.mxu0 %v1173
    %v1257 = vpop.f32.mrf.mxu0
    %v1258 = vadd.f32 0.0, %v1257
    %v1259 = vpop.f32.mrf.mxu0
    %1260 = vmatprep.mubr.f32.mxu0 0.0
    %1261 = vmatmul.mubr.f32.gmra.mxu0 %v1174
    %v1262 = vpop.f32.mrf.mxu0
    %v1263 = vadd.f32 0.0, %v1262
    %v1264 = vpop.f32.mrf.mxu0
    %1265 = vdwg.mxu0
    %1266 = vmatprep.subr.mxu0 0.0
    %1267 = vmatpush1.msra.mxu0 %v1172
    %1268 = vmatprep.subr.mxu0 0.0
    %1269 = vmatpush1.msra.mxu0 %v1171
    %1270 = vmatprep.subr.mxu0 0.0
    %1271 = vmatpush1.msra.mxu0 %v1170
    %1272 = vmatprep.subr.mxu0 0.0
    %1273 = vmatpush1.msra.mxu0 %v1169
    %1274 = vmatprep.subr.mxu0 0.0
    %1275 = vmatpush1.msra.mxu0 %v1168
    %1276 = vmatprep.subr.mxu0 0.0
    %1277 = vmatpush1.msra.mxu0 %v1167
    %1278 = vmatprep.subr.mxu0 0.0
    %1279 = vmatpush1.msra.mxu0 %v1166
    %1280 = vmatprep.subr.mxu0 0.0
    %1281 = vmatpush1.msra.mxu0 %v1165
    %1282 = vmatprep.subr.mxu0 0.0
    %1283 = vmatpush1.msra.mxu0 %v1164
    %1284 = vmatprep.subr.mxu0 0.0
    %1285 = vmatpush1.msra.mxu0 %v1163
    %1286 = vmatprep.subr.mxu0 0.0
    %1287 = vmatpush1.msra.mxu0 %v1162
    %1288 = vmatprep.subr.mxu0 0.0
    %1289 = vmatpush1.msra.mxu0 %v1161
    %1290 = vmatprep.subr.mxu0 0.0
    %1291 = vmatpush1.msra.mxu0 %v1160
    %1292 = vmatprep.subr.mxu0 0.0
    %1293 = vmatpush1.msra.mxu0 %v1159
    %1294 = vmatprep.subr.mxu0 0.0
    %1295 = vmatpush1.msra.mxu0 %v1158
    %1296 = vmatprep.subr.mxu0 0.0
    %1297 = vmatpush1.msra.mxu0 %v1157
    %1298 = vmatprep.subr.mxu0 0.0
    %1299 = vmatpush2.msra.mxu0 0.0
    %1300 = vmatprep.subr.mxu0 0.0
    %1301 = vmatpush2.msra.mxu0 0.0
    %1302 = vmatprep.subr.mxu0 0.0
    %1303 = vmatpush2.msra.mxu0 0.0
    %1304 = vmatprep.subr.mxu0 0.0
    %1305 = vmatpush2.msra.mxu0 0.0
    %1306 = vmatprep.subr.mxu0 0.0
    %1307 = vmatpush2.msra.mxu0 0.0
    %1308 = vmatprep.subr.mxu0 0.0
    %1309 = vmatpush2.msra.mxu0 0.0
    %1310 = vmatprep.subr.mxu0 0.0
    %1311 = vmatpush2.msra.mxu0 0.0
    %1312 = vmatprep.subr.mxu0 0.0
    %1313 = vmatpush2.msra.mxu0 0.0
    %1314 = vmatprep.subr.mxu0 0.0
    %1315 = vmatpush2.msra.mxu0 0.0
    %1316 = vmatprep.subr.mxu0 0.0
    %1317 = vmatpush2.msra.mxu0 0.0
    %1318 = vmatprep.subr.mxu0 0.0
    %1319 = vmatpush2.msra.mxu0 0.0
    %1320 = vmatprep.subr.mxu0 0.0
    %1321 = vmatpush2.msra.mxu0 0.0
    %1322 = vmatprep.subr.mxu0 0.0
    %1323 = vmatpush2.msra.mxu0 0.0
    %1324 = vmatprep.subr.mxu0 0.0
    %1325 = vmatpush2.msra.mxu0 0.0
    %1326 = vmatprep.subr.mxu0 0.0
    %1327 = vmatpush2.msra.mxu0 0.0
    %1328 = vmatprep.subr.mxu0 0.0
    %1329 = vmatpush2.msra.mxu0 0.0
    %1330 = vmatprep.mubr.f32.mxu0 0.0
    %1331 = vmatmul.mubr.f32.gmra.mxu0 %v1155
    %v1332 = vpop.f32.mrf.mxu0
    %v1333 = vadd.f32 %v1258, %v1332
    %v1334 = vpop.f32.mrf.mxu0
    %1335 = vmatprep.mubr.f32.mxu0 0.0
    %1336 = vmatmul.mubr.f32.gmra.mxu0 %v1156
    %v1337 = vpop.f32.mrf.mxu0
    %v1338 = vadd.f32 %v1263, %v1337
    %v1339 = vpop.f32.mrf.mxu0
    %1340 = vdwg.mxu0
    %v1341 = vld [vmem:[#allocation3 + $0x2] sm:$0xff]
    %v1342 = vld [vmem:[#allocation3 + $0xa] sm:$0xff]
    %v1343 = vld [vmem:[%s621] sm:$0xff]
    %v1344 = vld [vmem:[%s621 + $0x8] sm:$0xff]
    %v1345 = vld [vmem:[%s621 + $0x10] sm:$0xff]
    %v1346 = vld [vmem:[%s621 + $0x18] sm:$0xff]
    %v1347 = vld [vmem:[%s621 + $0x20] sm:$0xff]
    %v1348 = vld [vmem:[%s621 + $0x28] sm:$0xff]
    %v1349 = vld [vmem:[%s621 + $0x30] sm:$0xff]
    %v1350 = vld [vmem:[%s621 + $0x38] sm:$0xff]
    %v1351 = vld [vmem:[%s621 + $0x40] sm:$0xff]
    %v1352 = vld [vmem:[%s621 + $0x48] sm:$0xff]
    %v1353 = vld [vmem:[%s621 + $0x50] sm:$0xff]
    %v1354 = vld [vmem:[%s621 + $0x58] sm:$0xff]
    %v1355 = vld [vmem:[%s621 + $0x60] sm:$0xff]
    %v1356 = vld [vmem:[%s621 + $0x68] sm:$0xff]
    %v1357 = vld [vmem:[%s621 + $0x70] sm:$0xff]
    %v1358 = vld [vmem:[%s621 + $0x78] sm:$0xff]
    %1359 = vmatprep.subr.mxu0 0.0
    %1360 = vmatpush1.msra.mxu0 %v1358
    %1361 = vmatprep.subr.mxu0 0.0
    %1362 = vmatpush1.msra.mxu0 %v1357
    %1363 = vmatprep.subr.mxu0 0.0
    %1364 = vmatpush1.msra.mxu0 %v1356
    %1365 = vmatprep.subr.mxu0 0.0
    %1366 = vmatpush1.msra.mxu0 %v1355
    %1367 = vmatprep.subr.mxu0 0.0
    %1368 = vmatpush1.msra.mxu0 %v1354
    %1369 = vmatprep.subr.mxu0 0.0
    %1370 = vmatpush1.msra.mxu0 %v1353
    %1371 = vmatprep.subr.mxu0 0.0
    %1372 = vmatpush1.msra.mxu0 %v1352
    %1373 = vmatprep.subr.mxu0 0.0
    %1374 = vmatpush1.msra.mxu0 %v1351
    %1375 = vmatprep.subr.mxu0 0.0
    %1376 = vmatpush1.msra.mxu0 %v1350
    %1377 = vmatprep.subr.mxu0 0.0
    %1378 = vmatpush1.msra.mxu0 %v1349
    %1379 = vmatprep.subr.mxu0 0.0
    %1380 = vmatpush1.msra.mxu0 %v1348
    %1381 = vmatprep.subr.mxu0 0.0
    %1382 = vmatpush1.msra.mxu0 %v1347
    %1383 = vmatprep.subr.mxu0 0.0
    %1384 = vmatpush1.msra.mxu0 %v1346
    %1385 = vmatprep.subr.mxu0 0.0
    %1386 = vmatpush1.msra.mxu0 %v1345
    %1387 = vmatprep.subr.mxu0 0.0
    %1388 = vmatpush1.msra.mxu0 %v1344
    %1389 = vmatprep.subr.mxu0 0.0
    %1390 = vmatpush1.msra.mxu0 %v1343
    %1391 = vmatprep.subr.mxu0 0.0
    %1392 = vmatpush2.msra.mxu0 0.0
    %1393 = vmatprep.subr.mxu0 0.0
    %1394 = vmatpush2.msra.mxu0 0.0
    %1395 = vmatprep.subr.mxu0 0.0
    %1396 = vmatpush2.msra.mxu0 0.0
    %1397 = vmatprep.subr.mxu0 0.0
    %1398 = vmatpush2.msra.mxu0 0.0
    %1399 = vmatprep.subr.mxu0 0.0
    %1400 = vmatpush2.msra.mxu0 0.0
    %1401 = vmatprep.subr.mxu0 0.0
    %1402 = vmatpush2.msra.mxu0 0.0
    %1403 = vmatprep.subr.mxu0 0.0
    %1404 = vmatpush2.msra.mxu0 0.0
    %1405 = vmatprep.subr.mxu0 0.0
    %1406 = vmatpush2.msra.mxu0 0.0
    %1407 = vmatprep.subr.mxu0 0.0
    %1408 = vmatpush2.msra.mxu0 0.0
    %1409 = vmatprep.subr.mxu0 0.0
    %1410 = vmatpush2.msra.mxu0 0.0
    %1411 = vmatprep.subr.mxu0 0.0
    %1412 = vmatpush2.msra.mxu0 0.0
    %1413 = vmatprep.subr.mxu0 0.0
    %1414 = vmatpush2.msra.mxu0 0.0
    %1415 = vmatprep.subr.mxu0 0.0
    %1416 = vmatpush2.msra.mxu0 0.0
    %1417 = vmatprep.subr.mxu0 0.0
    %1418 = vmatpush2.msra.mxu0 0.0
    %1419 = vmatprep.subr.mxu0 0.0
    %1420 = vmatpush2.msra.mxu0 0.0
    %1421 = vmatprep.subr.mxu0 0.0
    %1422 = vmatpush2.msra.mxu0 0.0
    %1423 = vmatprep.mubr.f32.mxu0 0.0
    %1424 = vmatmul.mubr.f32.gmra.mxu0 %v1341
    %v1425 = vpop.f32.mrf.mxu0
    %v1426 = vadd.f32 0.0, %v1425
    %v1427 = vpop.f32.mrf.mxu0
    %1428 = vmatprep.mubr.f32.mxu0 0.0
    %1429 = vmatmul.mubr.f32.gmra.mxu0 %v1342
    %v1430 = vpop.f32.mrf.mxu0
    %v1431 = vadd.f32 0.0, %v1430
    %v1432 = vpop.f32.mrf.mxu0
    %1433 = vdwg.mxu0
    %v1434 = vadd.f32 %v1333, %v1426
    %v1435 = vadd.f32 %v1338, %v1431
    %v1436 = vld [vmem:[%s8] sm:$0x1]
    %v1438 = vlaneseq
    %v1439 = vshrl.u32 %v1438, 7
    %v1440 = vsub.s32 0, %v1439
    %v1441 = vrot.slane %v1436, %v1440
    %v1443 = vadd.f32 %v1434, %v1441
    %v1444 = vadd.f32 %v1435, %v1441
    %v1445 = vld [vmem:[#allocation10] sm:$0xff]
    %v1446 = vld [vmem:[#allocation10 + $0x8] sm:$0xff]
    %v1447 = vld [vmem:[#allocation10 + $0x10] sm:$0xff]
    %v1448 = vld [vmem:[#allocation10 + $0x18] sm:$0xff]
    %v1449 = vld [vmem:[#allocation10 + $0x20] sm:$0xff]
    %v1450 = vld [vmem:[#allocation10 + $0x28] sm:$0xff]
    %v1451 = vld [vmem:[#allocation10 + $0x30] sm:$0xff]
    %v1452 = vld [vmem:[#allocation10 + $0x38] sm:$0xff]
    %v1453 = vld [vmem:[%s10] sm:$0x1]
    %v1455 = vlaneseq
    %v1456 = vshrl.u32 %v1455, 7
    %v1457 = vsub.s32 0, %v1456
    %v1458 = vrot.slane %v1453, %v1457
    %v1461 = vsel %vm121, %v825, 0
    %v1464 = vsel %vm121, %v826, 0
    %1466 = vmatprep.subr.mxu0 0.0
    %1467 = vmatpush1.msra.mxu0 0.0
    %1468 = vmatprep.subr.mxu0 0.0
    %1469 = vmatpush1.msra.mxu0 0.0
    %1470 = vmatprep.subr.mxu0 0.0
    %1471 = vmatpush1.msra.mxu0 0.0
    %1472 = vmatprep.subr.mxu0 0.0
    %1473 = vmatpush1.msra.mxu0 0.0
    %1474 = vmatprep.subr.mxu0 0.0
    %1475 = vmatpush1.msra.mxu0 0.0
    %1476 = vmatprep.subr.mxu0 0.0
    %1477 = vmatpush1.msra.mxu0 0.0
    %1478 = vmatprep.subr.mxu0 0.0
    %1479 = vmatpush1.msra.mxu0 0.0
    %1480 = vmatprep.subr.mxu0 0.0
    %1481 = vmatpush1.msra.mxu0 0.0
    %1482 = vmatprep.subr.mxu0 0.0
    %1483 = vmatpush1.msra.mxu0 %v1452
    %1484 = vmatprep.subr.mxu0 0.0
    %1485 = vmatpush1.msra.mxu0 %v1451
    %1486 = vmatprep.subr.mxu0 0.0
    %1487 = vmatpush1.msra.mxu0 %v1450
    %1488 = vmatprep.subr.mxu0 0.0
    %1489 = vmatpush1.msra.mxu0 %v1449
    %1490 = vmatprep.subr.mxu0 0.0
    %1491 = vmatpush1.msra.mxu0 %v1448
    %1492 = vmatprep.subr.mxu0 0.0
    %1493 = vmatpush1.msra.mxu0 %v1447
    %1494 = vmatprep.subr.mxu0 0.0
    %1495 = vmatpush1.msra.mxu0 %v1446
    %1496 = vmatprep.subr.mxu0 0.0
    %1497 = vmatpush1.msra.mxu0 %v1445
    %1498 = vmatprep.subr.mxu0 0.0
    %1499 = vmatpush2.msra.mxu0 0.0
    %1500 = vmatprep.subr.mxu0 0.0
    %1501 = vmatpush2.msra.mxu0 0.0
    %1502 = vmatprep.subr.mxu0 0.0
    %1503 = vmatpush2.msra.mxu0 0.0
    %1504 = vmatprep.subr.mxu0 0.0
    %1505 = vmatpush2.msra.mxu0 0.0
    %1506 = vmatprep.subr.mxu0 0.0
    %1507 = vmatpush2.msra.mxu0 0.0
    %1508 = vmatprep.subr.mxu0 0.0
    %1509 = vmatpush2.msra.mxu0 0.0
    %1510 = vmatprep.subr.mxu0 0.0
    %1511 = vmatpush2.msra.mxu0 0.0
    %1512 = vmatprep.subr.mxu0 0.0
    %1513 = vmatpush2.msra.mxu0 0.0
    %1514 = vmatprep.subr.mxu0 0.0
    %1515 = vmatpush2.msra.mxu0 0.0
    %1516 = vmatprep.subr.mxu0 0.0
    %1517 = vmatpush2.msra.mxu0 0.0
    %1518 = vmatprep.subr.mxu0 0.0
    %1519 = vmatpush2.msra.mxu0 0.0
    %1520 = vmatprep.subr.mxu0 0.0
    %1521 = vmatpush2.msra.mxu0 0.0
    %1522 = vmatprep.subr.mxu0 0.0
    %1523 = vmatpush2.msra.mxu0 0.0
    %1524 = vmatprep.subr.mxu0 0.0
    %1525 = vmatpush2.msra.mxu0 0.0
    %1526 = vmatprep.subr.mxu0 0.0
    %1527 = vmatpush2.msra.mxu0 0.0
    %1528 = vmatprep.subr.mxu0 0.0
    %1529 = vmatpush2.msra.mxu0 0.0
    %1530 = vmatprep.mubr.f32.mxu0 0.0
    %1531 = vmatmul.mubr.f32.gmra.mxu0 %v1461
    %v1532 = vpop.f32.mrf.mxu0
    %v1533 = vadd.f32 %v1458, %v1532
    %v1534 = vpop.f32.mrf.mxu0
    %1535 = vmatprep.mubr.f32.mxu0 0.0
    %1536 = vmatmul.mubr.f32.gmra.mxu0 %v1464
    %v1537 = vpop.f32.mrf.mxu0
    %v1538 = vadd.f32 %v1458, %v1537
    %v1539 = vpop.f32.mrf.mxu0
    %1540 = vdwg.mxu0
    %v1541 = vadd.f32 %v1443, %v1533
    %v1542 = vadd.f32 %v1444, %v1538
    %s1543 = scalar_lea.vmem [#allocation12], 16
    %1544 = vst [vmem:[%s1543] sm:$0xff] %v1541
    %1545 = vst [vmem:[%s1543 + $0x8] sm:$0xff] %v1542
    // Predicated region
    $region62: #{tpu_custom_call.1} parent=1 // pred_check
      _
    $region63: #{tpu_custom_call.1} parent=1 // pred_check_branch
      %1547 = sbr.rel (0) target = $region65
    $region64: #{tpu_custom_call.1} parent=1 // pred_region
      %s1549 = ssub.s32 512, 512
      %1550 = vsyncadd [#allocation6], %s1549
      %s1551 = sshll.u32 [#allocation12], 4
      %s1552 = int_to_ptr.vmem [resolvable:$true] %s1551
      %1557 = dma.vmem_to_hbm [thread:$0]  %s1552, 512, %s11, [#allocation6], 128, 128, 8
    $region65: #{tpu_custom_call.1} parent=1 // pred_fallthru
      _
    // Predicated region
    $region66: #{tpu_custom_call.1} parent=1 // pred_check
      _
    $region67: #{tpu_custom_call.1} parent=1 // pred_check_branch
      %1559 = sbr.rel (0) target = $region69
    $region68: #{tpu_custom_call.1} parent=1 // pred_region
      %1560 = dma.done [#allocation6], 512
    $region69: #{tpu_custom_call.1} parent=1 // pred_fallthru
      _
    %1561 = vsyncpa [#allocation5], 1
    %1562 = vsyncpa [#allocation8], 1
    %1563 = vsyncpa [#allocation11], 1
    %1564 = vsyncpa [#allocation6], 1

</llo_original>
